<compile_context>
chip_gen: v5e
topology: v5e:2x2
jax: 0.10.0
libtpu: 0.0.40
codegen_flags: <defaults>
</compile_context>

<pallas_src>
import math

import numpy as np
import jax
import jax.numpy as jnp
from jax.experimental import pallas as pl
from jax.experimental.pallas import tpu as pltpu

EPS = 1e-5
INTER_DTYPE = jnp.bfloat16   # HBM dtype for the h1/h2 round trips
MM_DTYPE = jnp.bfloat16      # matmul operand dtype (accumulation stays f32)


# --------------------------------------------------------------------------
# VMEM budgeting / tiling plan
# --------------------------------------------------------------------------

def _vmem_caps():
    """(block_budget, vmem_limit) bytes; generation aware (64 MiB v7x floor)."""
    try:
        cap = int(pltpu.get_tpu_info().vmem_capacity_bytes)
    except Exception:
        cap = 64 * 1024 * 1024
    return int(cap * 0.55), int(cap * 0.80)


def _divisors_desc(n):
    return [d for d in range(n, 0, -1) if n % d == 0]


def _plan_tiles(n, length, col_bytes, const_bytes, block_budget):
    """Pick (nb, lt): batch rows and length columns handled per grid step."""
    avail = max(block_budget - 2 * const_bytes, 2 * col_bytes * 8)

    # largest multiple-of-128 divisor of `length` whose double-buffered tile
    # fits the budget; else fall back to the full (untiled) length axis.
    max_cols = max(avail // (2 * col_bytes), 8)
    lt = 0
    d = 128
    while d <= min(length, max_cols):
        if length % d == 0:
            lt = d
        d += 128
    if lt == 0:
        lt = length
    gl = length // lt

    # single batch row: split the length axis so >=2 grid steps exist
    # (keeps both v7x TensorCores busy).
    if n == 1 and gl == 1 and lt % 256 == 0:
        lt //= 2
        gl = 2

    # several batch rows per step when per-step work is tiny, but never
    # collapse the grid below 2 steps if >=2 iterations are available.
    max_nb = int(max(min(avail // (2 * col_bytes * lt), 8), 1))
    min_steps = 2 if n * gl >= 2 else 1
    nb = 1
    for cand in _divisors_desc(n):
        if cand <= max_nb and (n // cand) * gl >= min_steps:
            nb = cand
            break
    return nb, lt


def _compiler_params(vmem_limit):
    return pltpu.CompilerParams(
        dimension_semantics=("parallel", "parallel"),
        vmem_limit_bytes=int(vmem_limit),
    )


def _const_spec(shape):
    nd = len(shape)
    return pl.BlockSpec(shape, lambda i, t: (0,) * nd)


def _act_spec(nb, c, lt):
    return pl.BlockSpec((nb, c, lt), lambda i, t: (i, 0, t))


def _stats_spec(c_out):
    return pl.BlockSpec((1, 1, 2, c_out, 1), lambda i, t: (i, t, 0, 0, 0))


def _nbytes(shape, dtype):
    return math.prod(shape) * np.dtype(dtype).itemsize


def _cost(m_rows, c_in, c_out, byte_terms):
    flops = 2 * m_rows * c_in * c_out + 8 * m_rows * c_out
    return pl.CostEstimate(flops=int(flops), transcendentals=0,
                           bytes_accessed=int(sum(byte_terms)))


# --------------------------------------------------------------------------
# kernels
# --------------------------------------------------------------------------

def _linear_relu_stats_kernel(x_ref, w_ref, b_ref, h_ref, st_ref):
    """h = relu(W @ x + b) per batch row; one packed (sum, sumsq) block/step."""
    c_out = w_ref.shape[0]
    w = w_ref[...]
    b = b_ref[...]
    s_acc = jnp.zeros((c_out, 1), jnp.float32)
    sq_acc = jnp.zeros((c_out, 1), jnp.float32)
    for j in range(x_ref.shape[0]):                       # static batch sub-block
        x = x_ref[j].astype(MM_DTYPE)
        h = jnp.dot(w, x, preferred_element_type=jnp.float32)
        h = jnp.maximum(h + b, 0.0)
        h_ref[j] = h.astype(h_ref.dtype)
        s_acc = s_acc + jnp.sum(h, axis=1, keepdims=True)
        sq_acc = sq_acc + jnp.sum(h * h, axis=1, keepdims=True)
    st_ref[0, 0, 0] = s_acc
    st_ref[0, 0, 1] = sq_acc


def _linear_relu_kernel(x_ref, w_ref, b_ref, o_ref):
    """o = relu(W @ x + b), lane-dense (C_out, Lt) store, no stats."""
    w = w_ref[...]
    b = b_ref[...]
    for j in range(x_ref.shape[0]):
        x = x_ref[j].astype(MM_DTYPE)
        z = jnp.dot(w, x, preferred_element_type=jnp.float32)
        o_ref[j] = jnp.maximum(z + b, 0.0).astype(o_ref.dtype)


def _bn_linear_relu_stats_kernel(h_ref, scale_ref, shift_ref, w_ref, b_ref,
                                 xn_ref, hn_ref, st_ref):
    """xn = BN-affine(h) (emitted f32); hn = relu(W @ xn + b); packed stats."""
    c_out = w_ref.shape[0]
    w = w_ref[...]
    b = b_ref[...]
    scale = scale_ref[...]
    shift = shift_ref[...]
    s_acc = jnp.zeros((c_out, 1), jnp.float32)
    sq_acc = jnp.zeros((c_out, 1), jnp.float32)
    for j in range(h_ref.shape[0]):
        xn = h_ref[j].astype(jnp.float32) * scale + shift
        xn_ref[j] = xn
        hn = jnp.dot(w, xn.astype(MM_DTYPE), preferred_element_type=jnp.float32)
        hn = jnp.maximum(hn + b, 0.0)
        hn_ref[j] = hn.astype(hn_ref.dtype)
        s_acc = s_acc + jnp.sum(hn, axis=1, keepdims=True)
        sq_acc = sq_acc + jnp.sum(hn * hn, axis=1, keepdims=True)
    st_ref[0, 0, 0] = s_acc
    st_ref[0, 0, 1] = sq_acc


def _bn_linear_relu_last_kernel(h_ref, scale_ref, shift_ref, w_ref, b_ref,
                                xn_ref, o_ref):
    """xn = BN-affine(h) (emitted); o = relu(W @ xn + b), lane-dense (C3, Lt)."""
    w = w_ref[...]
    b = b_ref[...]
    scale = scale_ref[...]
    shift = shift_ref[...]
    for j in range(h_ref.shape[0]):
        xn = h_ref[j].astype(jnp.float32) * scale + shift
        xn_ref[j] = xn
        z = jnp.dot(w, xn.astype(MM_DTYPE), preferred_element_type=jnp.float32)
        o_ref[j] = jnp.maximum(z + b, 0.0).astype(o_ref.dtype)


# --------------------------------------------------------------------------
# pass wrappers
# --------------------------------------------------------------------------

def _pass_linear_relu_stats(x3d, w, b, nb, lt, vmem_limit):
    n, c_in, length = x3d.shape
    c_out = w.shape[0]
    gn, gl = n // nb, length // lt
    h_shape = (n, c_out, length)
    st_shape = (gn, gl, 2, c_out, 1)
    byte_terms = [_nbytes(x3d.shape, x3d.dtype), _nbytes(w.shape, w.dtype),
                  _nbytes((c_out, 1), jnp.float32),
                  _nbytes(h_shape, INTER_DTYPE), _nbytes(st_shape, jnp.float32)]
    return pl.pallas_call(
        _linear_relu_stats_kernel,
        grid=(gn, gl),
        in_specs=[_act_spec(nb, c_in, lt),
                  _const_spec((c_out, c_in)),
                  _const_spec((c_out, 1))],
        out_specs=(_act_spec(nb, c_out, lt), _stats_spec(c_out)),
        out_shape=(jax.ShapeDtypeStruct(h_shape, INTER_DTYPE),
                   jax.ShapeDtypeStruct(st_shape, jnp.float32)),
        compiler_params=_compiler_params(vmem_limit),
        cost_estimate=_cost(n * length, c_in, c_out, byte_terms),
    )(x3d, w, b.reshape(c_out, 1).astype(jnp.float32))


def _pass_linear_relu(x3d, w, b, nb, lt, vmem_limit):
    n, c_in, length = x3d.shape
    c_out = w.shape[0]
    gn, gl = n // nb, length // lt
    o_shape = (n, c_out, length)
    byte_terms = [_nbytes(x3d.shape, x3d.dtype), _nbytes(w.shape, w.dtype),
                  _nbytes((c_out, 1), jnp.float32), _nbytes(o_shape, jnp.float32)]
    return pl.pallas_call(
        _linear_relu_kernel,
        grid=(gn, gl),
        in_specs=[_act_spec(nb, c_in, lt),
                  _const_spec((c_out, c_in)),
                  _const_spec((c_out, 1))],
        out_specs=_act_spec(nb, c_out, lt),
        out_shape=jax.ShapeDtypeStruct(o_shape, jnp.float32),
        compiler_params=_compiler_params(vmem_limit),
        cost_estimate=_cost(n * length, c_in, c_out, byte_terms),
    )(x3d, w, b.reshape(c_out, 1).astype(jnp.float32))


def _pass_bn_linear_relu_stats(h, scale, shift, w, b, nb, lt, vmem_limit):
    n, c_in, length = h.shape
    c_out = w.shape[0]
    gn, gl = n // nb, length // lt
    xn_shape = (n, c_in, length)
    hn_shape = (n, c_out, length)
    st_shape = (gn, gl, 2, c_out, 1)
    byte_terms = [_nbytes(h.shape, h.dtype), _nbytes(w.shape, w.dtype),
                  2 * _nbytes((c_in, 1), jnp.float32),
                  _nbytes((c_out, 1), jnp.float32),
                  _nbytes(xn_shape, jnp.float32), _nbytes(hn_shape, INTER_DTYPE),
                  _nbytes(st_shape, jnp.float32)]
    return pl.pallas_call(
        _bn_linear_relu_stats_kernel,
        grid=(gn, gl),
        in_specs=[_act_spec(nb, c_in, lt),
                  _const_spec((c_in, 1)),
                  _const_spec((c_in, 1)),
                  _const_spec((c_out, c_in)),
                  _const_spec((c_out, 1))],
        out_specs=(_act_spec(nb, c_in, lt),
                   _act_spec(nb, c_out, lt),
                   _stats_spec(c_out)),
        out_shape=(jax.ShapeDtypeStruct(xn_shape, jnp.float32),
                   jax.ShapeDtypeStruct(hn_shape, INTER_DTYPE),
                   jax.ShapeDtypeStruct(st_shape, jnp.float32)),
        compiler_params=_compiler_params(vmem_limit),
        cost_estimate=_cost(n * length, c_in, c_out, byte_terms),
    )(h, scale, shift, w, b.reshape(c_out, 1).astype(jnp.float32))


def _pass_bn_linear_relu_last(h, scale, shift, w, b, nb, lt, vmem_limit):
    n, c_in, length = h.shape
    c_out = w.shape[0]
    gn, gl = n // nb, length // lt
    xn_shape = (n, c_in, length)
    o_shape = (n, c_out, length)
    byte_terms = [_nbytes(h.shape, h.dtype), _nbytes(w.shape, w.dtype),
                  2 * _nbytes((c_in, 1), jnp.float32),
                  _nbytes((c_out, 1), jnp.float32),
                  _nbytes(xn_shape, jnp.float32), _nbytes(o_shape, jnp.float32)]
    return pl.pallas_call(
        _bn_linear_relu_last_kernel,
        grid=(gn, gl),
        in_specs=[_act_spec(nb, c_in, lt),
                  _const_spec((c_in, 1)),
                  _const_spec((c_in, 1)),
                  _const_spec((c_out, c_in)),
                  _const_spec((c_out, 1))],
        out_specs=(_act_spec(nb, c_in, lt), _act_spec(nb, c_out, lt)),
        out_shape=(jax.ShapeDtypeStruct(xn_shape, jnp.float32),
                   jax.ShapeDtypeStruct(o_shape, jnp.float32)),
        compiler_params=_compiler_params(vmem_limit),
        cost_estimate=_cost(n * length, c_in, c_out, byte_terms),
    )(h, scale, shift, w, b.reshape(c_out, 1).astype(jnp.float32))


def _bn_scale_shift(stats, gamma, beta, m_rows):
    tot = jnp.sum(stats, axis=(0, 1))              # (2, C, 1): [sum, sumsq]
    mean = tot[0] / m_rows
    var = jnp.maximum(tot[1] / m_rows - mean * mean, 0.0)
    inv = jax.lax.rsqrt(var + EPS)
    scale = gamma.reshape(-1, 1) * inv             # (C, 1)
    shift = beta.reshape(-1, 1) - mean * scale     # (C, 1)
    return scale.astype(jnp.float32), shift.astype(jnp.float32)


# --------------------------------------------------------------------------
# forward
# --------------------------------------------------------------------------

def mlp_encoder_forward(x, params):
    """x: (N, C0, L) NCL input -> (x1, x2, x3); or (N, C0) 2-D input -> x3."""
    (w1, b1, g1, be1), (w2, b2, g2, be2), (w3, b3) = params
    f32 = lambda a: jnp.asarray(a, jnp.float32)
    w1, b1, g1, be1 = f32(w1), f32(b1), f32(g1), f32(be1)
    w2, b2, g2, be2 = f32(w2), f32(b2), f32(g2), f32(be2)
    w3, b3 = f32(w3), f32(b3)
    c1, c2, c3 = w1.shape[0], w2.shape[0], w3.shape[0]

    is_3d = (x.ndim == 3)
    if is_3d:
        n, c0, length = x.shape
        x3d = f32(x)
    else:
        rows, c0 = x.shape
        # one pseudo-batch row, examples on the lane axis; BN over examples.
        x3d = f32(x).T.reshape(1, c0, rows)
        n, length = 1, rows
    m_rows = n * length

    # tiling plan: worst-case per-lane-column bytes across the three sweeps
    f32b = 4
    ib = np.dtype(INTER_DTYPE).itemsize
    if is_3d:
        col_bytes = max(c0 * f32b + c1 * ib,
                        c1 * ib + c1 * f32b + c2 * ib,
                        c2 * ib + c2 * f32b + c3 * f32b)
    else:
        col_bytes = max(c0 * f32b + c1 * ib,
                        c1 * ib + c2 * ib,
                        c2 * ib + c3 * f32b)
    const_bytes = 2 * max(w1.size, w2.size, w3.size) * np.dtype(MM_DTYPE).itemsize
    block_budget, vmem_limit = _vmem_caps()
    nb, lt = _plan_tiles(n, length, col_bytes, const_bytes, block_budget)

    # sweep A: layer-1 linear + ReLU (+ packed batch stats)
    h1, st1 = _pass_linear_relu_stats(x3d, w1.astype(MM_DTYPE), b1, nb, lt,
                                      vmem_limit)
    scale1, shift1 = _bn_scale_shift(st1, g1, be1, m_rows)

    if is_3d:
        # sweep B: BN1 (x1 emitted) + layer-2 linear + ReLU (+ stats)
        x1, h2, st2 = _pass_bn_linear_relu_stats(
            h1, scale1, shift1, w2.astype(MM_DTYPE), b2, nb, lt, vmem_limit)
        scale2, shift2 = _bn_scale_shift(st2, g2, be2, m_rows)
        # sweep C: BN2 (x2 emitted) + layer-3 linear + ReLU (no BN), lane-dense
        x2, x3_ncl = _pass_bn_linear_relu_last(
            h2, scale2, shift2, w3.astype(MM_DTYPE), b3, nb, lt, vmem_limit)
        x3 = jnp.transpose(x3_ncl, (0, 2, 1))   # single XLA NCL -> NLC transpose
        return x1, x2, x3

    # 2-D path: x1/x2 are not returned, so fold each BN affine into the next
    # layer's weights (W' = W*scale, b' = b + W@shift); no xn elementwise pass.
    w2f = (w2 * scale1.reshape(1, c1)).astype(MM_DTYPE)
    b2f = b2 + w2 @ shift1.reshape(c1)
    h2, st2 = _pass_linear_relu_stats(h1, w2f, b2f, nb, lt, vmem_limit)
    scale2, shift2 = _bn_scale_shift(st2, g2, be2, m_rows)

    w3f = (w3 * scale2.reshape(1, c2)).astype(MM_DTYPE)
    b3f = b3 + w3 @ shift2.reshape(c2)
    x3_ncl = _pass_linear_relu(h2, w3f, b3f, nb, lt, vmem_limit)
    return x3_ncl[0].T                           # (rows, C3)


# --------------------------------------------------------------------------
# pure-JAX references & params
# --------------------------------------------------------------------------

def _reference_forward(x, params):
    (w1, b1, g1, be1), (w2, b2, g2, be2), (w3, b3) = params

    def bn(h, g, be):  # (N, C, L): batch stats over (N, L), biased variance
        mean = jnp.mean(h, axis=(0, 2), keepdims=True)
        var = jnp.mean((h - mean) ** 2, axis=(0, 2), keepdims=True)
        return (g[None, :, None] * (h - mean) * jax.lax.rsqrt(var + EPS)
                + be[None, :, None])

    def lin(h, w, b):  # (N, C_in, L) -> (N, C_out, L)
        return jax.nn.relu(jnp.einsum('ncl,oc->nol', h, w) + b[None, :, None])

    h1 = lin(x, w1, b1); x1 = bn(h1, g1, be1)
    h2 = lin(x1, w2, b2); x2 = bn(h2, g2, be2)
    h3 = lin(x2, w3, b3)
    return x1, x2, jnp.transpose(h3, (0, 2, 1))


def _reference_forward_2d(x, params):
    (w1, b1, g1, be1), (w2, b2, g2, be2), (w3, b3) = params

    def bn(h, g, be):  # (N, C): batch stats over N, biased variance
        mean = jnp.mean(h, axis=0, keepdims=True)
        var = jnp.mean((h - mean) ** 2, axis=0, keepdims=True)
        return g[None, :] * (h - mean) * jax.lax.rsqrt(var + EPS) + be[None, :]

    h1 = jax.nn.relu(x @ w1.T + b1); x1 = bn(h1, g1, be1)
    h2 = jax.nn.relu(x1 @ w2.T + b2); x2 = bn(h2, g2, be2)
    return jax.nn.relu(x2 @ w3.T + b3)


def init_params(key, layer_list):
    ks = jax.random.split(key, 6)

    def xavier(k, fan_out, fan_in):
        scale = jnp.sqrt(2.0 / (fan_in + fan_out))
        return jax.random.normal(k, (fan_out, fan_in), jnp.float32) * scale

    c0, c1, c2, c3 = layer_list
    w1 = xavier(ks[0], c1, c0)
    b1 = jax.random.normal(ks[1], (c1,), jnp.float32) * 0.01
    g1, be1 = jnp.ones((c1,), jnp.float32), jnp.zeros((c1,), jnp.float32)

    w2 = xavier(ks[2], c2, c1)
    b2 = jax.random.normal(ks[3], (c2,), jnp.float32) * 0.01
    g2, be2 = jnp.ones((c2,), jnp.float32), jnp.zeros((c2,), jnp.float32)

    w3 = xavier(ks[4], c3, c2)
    b3 = jax.random.normal(ks[5], (c3,), jnp.float32) * 0.01

    return (w1, b1, g1, be1), (w2, b2, g2, be2), (w3, b3)


if __name__ == "__main__":
    key = jax.random.PRNGKey(0)
    k_param, k_x, k_x2d = jax.random.split(key, 3)

    layer_list = [4, 8, 16, 32]   # C0 -> C1 -> C2 -> C3
    N, L = 2, 16

    params = init_params(k_param, layer_list)
    x = jax.random.normal(k_x, (N, layer_list[0], L), jnp.float32)   # NCL input

    fwd = jax.jit(mlp_encoder_forward)
    x1, x2, x3 = fwd(x, params)
    jax.block_until_ready((x1, x2, x3))

    assert x1.shape == (N, layer_list[1], L)
    assert x2.shape == (N, layer_list[2], L)
    assert x3.shape == (N, L, layer_list[3])

    # bf16 intermediates / matmul operands: validate at 5e-2 (typical error is
    # well below; set INTER_DTYPE / MM_DTYPE = jnp.float32 for tighter runs).
    TOL = dict(atol=5e-2, rtol=5e-2)
    r1, r2, r3 = _reference_forward(x, params)
    assert bool(jnp.allclose(x1, r1, **TOL))
    assert bool(jnp.allclose(x2, r2, **TOL))
    assert bool(jnp.allclose(x3, r3, **TOL))

    # 2-D input path: module returns only x3
    x2d = jax.random.normal(k_x2d, (8, layer_list[0]), jnp.float32)
    y2d = fwd(x2d, params)
    jax.block_until_ready(y2d)
    assert y2d.shape == (8, layer_list[3])
    r2d = _reference_forward_2d(x2d, params)
    assert bool(jnp.allclose(y2d, r2d, **TOL))

    print("KERNEL_OK")
</pallas_src>

<mosaic_0001>
module attributes {stable_mosaic.version = 11 : i64} {
  func.func @_linear_relu_stats_kernel(%arg0: i32, %arg1: i32, %arg2: memref<1x4x16xf32, #tpu.memory_space<vmem>>, %arg3: memref<8x4xbf16, #tpu.memory_space<vmem>>, %arg4: memref<8x1xf32, #tpu.memory_space<vmem>>, %arg5: memref<1x8x16xbf16, #tpu.memory_space<vmem>>, %arg6: memref<1x1x2x8x1xf32, #tpu.memory_space<vmem>>) attributes {dimension_semantics = [#tpu.dimension_semantics<parallel>, #tpu.dimension_semantics<parallel>], iteration_bounds = array<i64: 2, 1>, scalar_prefetch = 0 : i64, scratch_operands = 0 : i64, tpu.core_type = #tpu.core_type<tc>, window_params = [{transform_indices = @transform_0, window_bounds = array<i64: 1, 4, 16>}, {pipeline_mode = #tpu.pipeline_mode<synchronous>, transform_indices = @transform_1, window_bounds = array<i64: 8, 4>}, {pipeline_mode = #tpu.pipeline_mode<synchronous>, transform_indices = @transform_2, window_bounds = array<i64: 8, 1>}, {transform_indices = @transform_3, window_bounds = array<i64: 1, 8, 16>}, {transform_indices = @transform_4, window_bounds = array<i64: 1, 1, 2, 8, 1>}]} {
    %c0 = arith.constant 0 : index
    %c0_0 = arith.constant 0 : index
    %0 = vector.load %arg3[%c0, %c0_0] : memref<8x4xbf16, #tpu.memory_space<vmem>>, vector<8x4xbf16>
    %c0_1 = arith.constant 0 : index
    %c0_2 = arith.constant 0 : index
    %1 = vector.load %arg4[%c0_1, %c0_2] : memref<8x1xf32, #tpu.memory_space<vmem>>, vector<8x1xf32>
    %cst = arith.constant 0.000000e+00 : f32
    %2 = vector.broadcast %cst : f32 to vector<8x1xf32>
    %cst_3 = arith.constant 0.000000e+00 : f32
    %3 = vector.broadcast %cst_3 : f32 to vector<8x1xf32>
    %c0_4 = arith.constant 0 : index
    %c0_5 = arith.constant 0 : index
    %c0_6 = arith.constant 0 : index
    %4 = vector.load %arg2[%c0_4, %c0_5, %c0_6] : memref<1x4x16xf32, #tpu.memory_space<vmem>>, vector<1x4x16xf32>
    %5 = vector.shape_cast %4 : vector<1x4x16xf32> to vector<4x16xf32>
    %6 = arith.truncf %5 : vector<4x16xf32> to vector<4x16xbf16>
    %cst_7 = arith.constant dense<0.000000e+00> : vector<8x16xf32>
    %7 = tpu.matmul %0, %6, %cst_7 {dimension_numbers = #tpu.dot_dimension_numbers<[1], [0], [0], [1], [0, 0, 1, 1], [], []>} : vector<8x4xbf16>, vector<4x16xbf16>, vector<8x16xf32> -> vector<8x16xf32>
    %8 = vector.broadcast %1 : vector<8x1xf32> to vector<8x16xf32>
    %9 = arith.addf %7, %8 : vector<8x16xf32>
    %cst_8 = arith.constant 0.000000e+00 : f32
    %10 = vector.broadcast %cst_8 : f32 to vector<8x16xf32>
    %11 = arith.maximumf %9, %10 : vector<8x16xf32>
    %12 = arith.truncf %11 : vector<8x16xf32> to vector<8x16xbf16>
    %c0_9 = arith.constant 0 : index
    %c0_10 = arith.constant 0 : index
    %c0_11 = arith.constant 0 : index
    %13 = vector.load %arg5[%c0_9, %c0_10, %c0_11] : memref<1x8x16xbf16, #tpu.memory_space<vmem>>, vector<1x8x16xbf16>
    %14 = vector.shape_cast %13 : vector<1x8x16xbf16> to vector<8x16xbf16>
    %15 = vector.shape_cast %12 : vector<8x16xbf16> to vector<1x8x16xbf16>
    tpu.vector_store %arg5[%c0_9, %c0_10, %c0_11], %15 {strides = array<i32>} : memref<1x8x16xbf16, #tpu.memory_space<vmem>>, vector<1x8x16xbf16>,
    %cst_12 = arith.constant dense<0.000000e+00> : vector<8xf32>
    %16 = vector.multi_reduction <add>, %11, %cst_12 [1] : vector<8x16xf32> to vector<8xf32>
    %17 = vector.shape_cast %16 : vector<8xf32> to vector<8x1xf32>
    %18 = arith.addf %2, %17 : vector<8x1xf32>
    %19 = arith.mulf %11, %11 : vector<8x16xf32>
    %cst_13 = arith.constant dense<0.000000e+00> : vector<8xf32>
    %20 = vector.multi_reduction <add>, %19, %cst_13 [1] : vector<8x16xf32> to vector<8xf32>
    %21 = vector.shape_cast %20 : vector<8xf32> to vector<8x1xf32>
    %22 = arith.addf %3, %21 : vector<8x1xf32>
    %c0_14 = arith.constant 0 : index
    %c0_15 = arith.constant 0 : index
    %c0_16 = arith.constant 0 : index
    %c0_17 = arith.constant 0 : index
    %c0_18 = arith.constant 0 : index
    %23 = vector.load %arg6[%c0_14, %c0_15, %c0_16, %c0_17, %c0_18] : memref<1x1x2x8x1xf32, #tpu.memory_space<vmem>>, vector<1x1x1x8x1xf32>
    %24 = vector.shape_cast %23 : vector<1x1x1x8x1xf32> to vector<8x1xf32>
    %25 = vector.shape_cast %18 : vector<8x1xf32> to vector<1x1x1x8x1xf32>
    tpu.vector_store %arg6[%c0_14, %c0_15, %c0_16, %c0_17, %c0_18], %25 {strides = array<i32>} : memref<1x1x2x8x1xf32, #tpu.memory_space<vmem>>, vector<1x1x1x8x1xf32>,
    %c0_19 = arith.constant 0 : index
    %c0_20 = arith.constant 0 : index
    %c1 = arith.constant 1 : index
    %c0_21 = arith.constant 0 : index
    %c0_22 = arith.constant 0 : index
    %26 = vector.load %arg6[%c0_19, %c0_20, %c1, %c0_21, %c0_22] : memref<1x1x2x8x1xf32, #tpu.memory_space<vmem>>, vector<1x1x1x8x1xf32>
    %27 = vector.shape_cast %26 : vector<1x1x1x8x1xf32> to vector<8x1xf32>
    %28 = vector.shape_cast %22 : vector<8x1xf32> to vector<1x1x1x8x1xf32>
    tpu.vector_store %arg6[%c0_19, %c0_20, %c1, %c0_21, %c0_22], %28 {strides = array<i32>} : memref<1x1x2x8x1xf32, #tpu.memory_space<vmem>>, vector<1x1x1x8x1xf32>,
    return
  }
  func.func @transform_0(%arg0: i32, %arg1: i32) -> (i32, i32, i32) {
    %c0_i32 = arith.constant 0 : i32
    %c0_i32_0 = arith.constant 0 : i32
    return %arg0, %c0_i32, %arg1 : i32, i32, i32
  }
  func.func @transform_1(%arg0: i32, %arg1: i32) -> (i32, i32) {
    %c0_i32 = arith.constant 0 : i32
    %c0_i32_0 = arith.constant 0 : i32
    %c0_i32_1 = arith.constant 0 : i32
    return %c0_i32, %c0_i32_0 : i32, i32
  }
  func.func @transform_2(%arg0: i32, %arg1: i32) -> (i32, i32) {
    %c0_i32 = arith.constant 0 : i32
    %c0_i32_0 = arith.constant 0 : i32
    %c0_i32_1 = arith.constant 0 : i32
    return %c0_i32, %c0_i32_0 : i32, i32
  }
  func.func @transform_3(%arg0: i32, %arg1: i32) -> (i32, i32, i32) {
    %c0_i32 = arith.constant 0 : i32
    %c0_i32_0 = arith.constant 0 : i32
    return %arg0, %c0_i32, %arg1 : i32, i32, i32
  }
  func.func @transform_4(%arg0: i32, %arg1: i32) -> (i32, i32, i32, i32, i32) {
    %c0_i32 = arith.constant 0 : i32
    %c0_i32_0 = arith.constant 0 : i32
    %c0_i32_1 = arith.constant 0 : i32
    %c0_i32_2 = arith.constant 0 : i32
    return %arg0, %arg1, %c0_i32, %c0_i32_0, %c0_i32_1 : i32, i32, i32, i32, i32
  }
}

module attributes {stable_mosaic.version = 11 : i64} {
  func.func @_bn_linear_relu_last_kernel(%arg0: i32, %arg1: i32, %arg2: memref<1x16x16xbf16, #tpu.memory_space<vmem>>, %arg3: memref<16x1xf32, #tpu.memory_space<vmem>>, %arg4: memref<16x1xf32, #tpu.memory_space<vmem>>, %arg5: memref<32x16xbf16, #tpu.memory_space<vmem>>, %arg6: memref<32x1xf32, #tpu.memory_space<vmem>>, %arg7: memref<1x16x16xf32, #tpu.memory_space<vmem>>, %arg8: memref<1x32x16xf32, #tpu.memory_space<vmem>>) attributes {dimension_semantics = [#tpu.dimension_semantics<parallel>, #tpu.dimension_semantics<parallel>], iteration_bounds = array<i64: 2, 1>, scalar_prefetch = 0 : i64, scratch_operands = 0 : i64, tpu.core_type = #tpu.core_type<tc>, window_params = [{transform_indices = @transform_0, window_bounds = array<i64: 1, 16, 16>}, {pipeline_mode = #tpu.pipeline_mode<synchronous>, transform_indices = @transform_1, window_bounds = array<i64: 16, 1>}, {pipeline_mode = #tpu.pipeline_mode<synchronous>, transform_indices = @transform_2, window_bounds = array<i64: 16, 1>}, {pipeline_mode = #tpu.pipeline_mode<synchronous>, transform_indices = @transform_3, window_bounds = array<i64: 32, 16>}, {pipeline_mode = #tpu.pipeline_mode<synchronous>, transform_indices = @transform_4, window_bounds = array<i64: 32, 1>}, {transform_indices = @transform_5, window_bounds = array<i64: 1, 16, 16>}, {transform_indices = @transform_6, window_bounds = array<i64: 1, 32, 16>}]} {
    %c0 = arith.constant 0 : index
    %c0_0 = arith.constant 0 : index
    %0 = vector.load %arg5[%c0, %c0_0] : memref<32x16xbf16, #tpu.memory_space<vmem>>, vector<32x16xbf16>
    %c0_1 = arith.constant 0 : index
    %c0_2 = arith.constant 0 : index
    %1 = vector.load %arg6[%c0_1, %c0_2] : memref<32x1xf32, #tpu.memory_space<vmem>>, vector<32x1xf32>
    %c0_3 = arith.constant 0 : index
    %c0_4 = arith.constant 0 : index
    %2 = vector.load %arg3[%c0_3, %c0_4] : memref<16x1xf32, #tpu.memory_space<vmem>>, vector<16x1xf32>
    %c0_5 = arith.constant 0 : index
    %c0_6 = arith.constant 0 : index
    %3 = vector.load %arg4[%c0_5, %c0_6] : memref<16x1xf32, #tpu.memory_space<vmem>>, vector<16x1xf32>
    %c0_7 = arith.constant 0 : index
    %c0_8 = arith.constant 0 : index
    %c0_9 = arith.constant 0 : index
    %4 = vector.load %arg2[%c0_7, %c0_8, %c0_9] : memref<1x16x16xbf16, #tpu.memory_space<vmem>>, vector<1x16x16xbf16>
    %5 = vector.shape_cast %4 : vector<1x16x16xbf16> to vector<16x16xbf16>
    %6 = arith.extf %5 : vector<16x16xbf16> to vector<16x16xf32>
    %7 = vector.broadcast %2 : vector<16x1xf32> to vector<16x16xf32>
    %8 = arith.mulf %6, %7 : vector<16x16xf32>
    %9 = vector.broadcast %3 : vector<16x1xf32> to vector<16x16xf32>
    %10 = arith.addf %8, %9 : vector<16x16xf32>
    %c0_10 = arith.constant 0 : index
    %c0_11 = arith.constant 0 : index
    %c0_12 = arith.constant 0 : index
    %11 = vector.load %arg7[%c0_10, %c0_11, %c0_12] : memref<1x16x16xf32, #tpu.memory_space<vmem>>, vector<1x16x16xf32>
    %12 = vector.shape_cast %11 : vector<1x16x16xf32> to vector<16x16xf32>
    %13 = vector.shape_cast %10 : vector<16x16xf32> to vector<1x16x16xf32>
    tpu.vector_store %arg7[%c0_10, %c0_11, %c0_12], %13 {strides = array<i32>} : memref<1x16x16xf32, #tpu.memory_space<vmem>>, vector<1x16x16xf32>,
    %14 = arith.truncf %10 : vector<16x16xf32> to vector<16x16xbf16>
    %cst = arith.constant dense<0.000000e+00> : vector<32x16xf32>
    %15 = tpu.matmul %0, %14, %cst {dimension_numbers = #tpu.dot_dimension_numbers<[1], [0], [0], [1], [0, 0, 1, 1], [], []>} : vector<32x16xbf16>, vector<16x16xbf16>, vector<32x16xf32> -> vector<32x16xf32>
    %16 = vector.broadcast %1 : vector<32x1xf32> to vector<32x16xf32>
    %17 = arith.addf %15, %16 : vector<32x16xf32>
    %cst_13 = arith.constant 0.000000e+00 : f32
    %18 = vector.broadcast %cst_13 : f32 to vector<32x16xf32>
    %19 = arith.maximumf %17, %18 : vector<32x16xf32>
    %c0_14 = arith.constant 0 : index
    %c0_15 = arith.constant 0 : index
    %c0_16 = arith.constant 0 : index
    %20 = vector.load %arg8[%c0_14, %c0_15, %c0_16] : memref<1x32x16xf32, #tpu.memory_space<vmem>>, vector<1x32x16xf32>
    %21 = vector.shape_cast %20 : vector<1x32x16xf32> to vector<32x16xf32>
    %22 = vector.shape_cast %19 : vector<32x16xf32> to vector<1x32x16xf32>
    tpu.vector_store %arg8[%c0_14, %c0_15, %c0_16], %22 {strides = array<i32>} : memref<1x32x16xf32, #tpu.memory_space<vmem>>, vector<1x32x16xf32>,
    return
  }
  func.func @transform_0(%arg0: i32, %arg1: i32) -> (i32, i32, i32) {
    %c0_i32 = arith.constant 0 : i32
    %c0_i32_0 = arith.constant 0 : i32
    return %arg0, %c0_i32, %arg1 : i32, i32, i32
  }
  func.func @transform_1(%arg0: i32, %arg1: i32) -> (i32, i32) {
    %c0_i32 = arith.constant 0 : i32
    %c0_i32_0 = arith.constant 0 : i32
    %c0_i32_1 = arith.constant 0 : i32
    return %c0_i32, %c0_i32_0 : i32, i32
  }
  func.func @transform_2(%arg0: i32, %arg1: i32) -> (i32, i32) {
    %c0_i32 = arith.constant 0 : i32
    %c0_i32_0 = arith.constant 0 : i32
    %c0_i32_1 = arith.constant 0 : i32
    return %c0_i32, %c0_i32_0 : i32, i32
  }
  func.func @transform_3(%arg0: i32, %arg1: i32) -> (i32, i32) {
    %c0_i32 = arith.constant 0 : i32
    %c0_i32_0 = arith.constant 0 : i32
    %c0_i32_1 = arith.constant 0 : i32
    return %c0_i32, %c0_i32_0 : i32, i32
  }
  func.func @transform_4(%arg0: i32, %arg1: i32) -> (i32, i32) {
    %c0_i32 = arith.constant 0 : i32
    %c0_i32_0 = arith.constant 0 : i32
    %c0_i32_1 = arith.constant 0 : i32
    return %c0_i32, %c0_i32_0 : i32, i32
  }
  func.func @transform_5(%arg0: i32, %arg1: i32) -> (i32, i32, i32) {
    %c0_i32 = arith.constant 0 : i32
    %c0_i32_0 = arith.constant 0 : i32
    return %arg0, %c0_i32, %arg1 : i32, i32, i32
  }
  func.func @transform_6(%arg0: i32, %arg1: i32) -> (i32, i32, i32) {
    %c0_i32 = arith.constant 0 : i32
    %c0_i32_0 = arith.constant 0 : i32
    return %arg0, %c0_i32, %arg1 : i32, i32, i32
  }
}

module attributes {stable_mosaic.version = 11 : i64} {
  func.func @_bn_linear_relu_stats_kernel(%arg0: i32, %arg1: i32, %arg2: memref<1x8x16xbf16, #tpu.memory_space<vmem>>, %arg3: memref<8x1xf32, #tpu.memory_space<vmem>>, %arg4: memref<8x1xf32, #tpu.memory_space<vmem>>, %arg5: memref<16x8xbf16, #tpu.memory_space<vmem>>, %arg6: memref<16x1xf32, #tpu.memory_space<vmem>>, %arg7: memref<1x8x16xf32, #tpu.memory_space<vmem>>, %arg8: memref<1x16x16xbf16, #tpu.memory_space<vmem>>, %arg9: memref<1x1x2x16x1xf32, #tpu.memory_space<vmem>>) attributes {dimension_semantics = [#tpu.dimension_semantics<parallel>, #tpu.dimension_semantics<parallel>], iteration_bounds = array<i64: 2, 1>, scalar_prefetch = 0 : i64, scratch_operands = 0 : i64, tpu.core_type = #tpu.core_type<tc>, window_params = [{transform_indices = @transform_0, window_bounds = array<i64: 1, 8, 16>}, {pipeline_mode = #tpu.pipeline_mode<synchronous>, transform_indices = @transform_1, window_bounds = array<i64: 8, 1>}, {pipeline_mode = #tpu.pipeline_mode<synchronous>, transform_indices = @transform_2, window_bounds = array<i64: 8, 1>}, {pipeline_mode = #tpu.pipeline_mode<synchronous>, transform_indices = @transform_3, window_bounds = array<i64: 16, 8>}, {pipeline_mode = #tpu.pipeline_mode<synchronous>, transform_indices = @transform_4, window_bounds = array<i64: 16, 1>}, {transform_indices = @transform_5, window_bounds = array<i64: 1, 8, 16>}, {transform_indices = @transform_6, window_bounds = array<i64: 1, 16, 16>}, {transform_indices = @transform_7, window_bounds = array<i64: 1, 1, 2, 16, 1>}]} {
    %c0 = arith.constant 0 : index
    %c0_0 = arith.constant 0 : index
    %0 = vector.load %arg5[%c0, %c0_0] : memref<16x8xbf16, #tpu.memory_space<vmem>>, vector<16x8xbf16>
    %c0_1 = arith.constant 0 : index
    %c0_2 = arith.constant 0 : index
    %1 = vector.load %arg6[%c0_1, %c0_2] : memref<16x1xf32, #tpu.memory_space<vmem>>, vector<16x1xf32>
    %c0_3 = arith.constant 0 : index
    %c0_4 = arith.constant 0 : index
    %2 = vector.load %arg3[%c0_3, %c0_4] : memref<8x1xf32, #tpu.memory_space<vmem>>, vector<8x1xf32>
    %c0_5 = arith.constant 0 : index
    %c0_6 = arith.constant 0 : index
    %3 = vector.load %arg4[%c0_5, %c0_6] : memref<8x1xf32, #tpu.memory_space<vmem>>, vector<8x1xf32>
    %cst = arith.constant 0.000000e+00 : f32
    %4 = vector.broadcast %cst : f32 to vector<16x1xf32>
    %cst_7 = arith.constant 0.000000e+00 : f32
    %5 = vector.broadcast %cst_7 : f32 to vector<16x1xf32>
    %c0_8 = arith.constant 0 : index
    %c0_9 = arith.constant 0 : index
    %c0_10 = arith.constant 0 : index
    %6 = vector.load %arg2[%c0_8, %c0_9, %c0_10] : memref<1x8x16xbf16, #tpu.memory_space<vmem>>, vector<1x8x16xbf16>
    %7 = vector.shape_cast %6 : vector<1x8x16xbf16> to vector<8x16xbf16>
    %8 = arith.extf %7 : vector<8x16xbf16> to vector<8x16xf32>
    %9 = vector.broadcast %2 : vector<8x1xf32> to vector<8x16xf32>
    %10 = arith.mulf %8, %9 : vector<8x16xf32>
    %11 = vector.broadcast %3 : vector<8x1xf32> to vector<8x16xf32>
    %12 = arith.addf %10, %11 : vector<8x16xf32>
    %c0_11 = arith.constant 0 : index
    %c0_12 = arith.constant 0 : index
    %c0_13 = arith.constant 0 : index
    %13 = vector.load %arg7[%c0_11, %c0_12, %c0_13] : memref<1x8x16xf32, #tpu.memory_space<vmem>>, vector<1x8x16xf32>
    %14 = vector.shape_cast %13 : vector<1x8x16xf32> to vector<8x16xf32>
    %15 = vector.shape_cast %12 : vector<8x16xf32> to vector<1x8x16xf32>
    tpu.vector_store %arg7[%c0_11, %c0_12, %c0_13], %15 {strides = array<i32>} : memref<1x8x16xf32, #tpu.memory_space<vmem>>, vector<1x8x16xf32>,
    %16 = arith.truncf %12 : vector<8x16xf32> to vector<8x16xbf16>
    %cst_14 = arith.constant dense<0.000000e+00> : vector<16x16xf32>
    %17 = tpu.matmul %0, %16, %cst_14 {dimension_numbers = #tpu.dot_dimension_numbers<[1], [0], [0], [1], [0, 0, 1, 1], [], []>} : vector<16x8xbf16>, vector<8x16xbf16>, vector<16x16xf32> -> vector<16x16xf32>
    %18 = vector.broadcast %1 : vector<16x1xf32> to vector<16x16xf32>
    %19 = arith.addf %17, %18 : vector<16x16xf32>
    %cst_15 = arith.constant 0.000000e+00 : f32
    %20 = vector.broadcast %cst_15 : f32 to vector<16x16xf32>
    %21 = arith.maximumf %19, %20 : vector<16x16xf32>
    %22 = arith.truncf %21 : vector<16x16xf32> to vector<16x16xbf16>
    %c0_16 = arith.constant 0 : index
    %c0_17 = arith.constant 0 : index
    %c0_18 = arith.constant 0 : index
    %23 = vector.load %arg8[%c0_16, %c0_17, %c0_18] : memref<1x16x16xbf16, #tpu.memory_space<vmem>>, vector<1x16x16xbf16>
    %24 = vector.shape_cast %23 : vector<1x16x16xbf16> to vector<16x16xbf16>
    %25 = vector.shape_cast %22 : vector<16x16xbf16> to vector<1x16x16xbf16>
    tpu.vector_store %arg8[%c0_16, %c0_17, %c0_18], %25 {strides = array<i32>} : memref<1x16x16xbf16, #tpu.memory_space<vmem>>, vector<1x16x16xbf16>,
    %cst_19 = arith.constant dense<0.000000e+00> : vector<16xf32>
    %26 = vector.multi_reduction <add>, %21, %cst_19 [1] : vector<16x16xf32> to vector<16xf32>
    %27 = vector.shape_cast %26 : vector<16xf32> to vector<16x1xf32>
    %28 = arith.addf %4, %27 : vector<16x1xf32>
    %29 = arith.mulf %21, %21 : vector<16x16xf32>
    %cst_20 = arith.constant dense<0.000000e+00> : vector<16xf32>
    %30 = vector.multi_reduction <add>, %29, %cst_20 [1] : vector<16x16xf32> to vector<16xf32>
    %31 = vector.shape_cast %30 : vector<16xf32> to vector<16x1xf32>
    %32 = arith.addf %5, %31 : vector<16x1xf32>
    %c0_21 = arith.constant 0 : index
    %c0_22 = arith.constant 0 : index
    %c0_23 = arith.constant 0 : index
    %c0_24 = arith.constant 0 : index
    %c0_25 = arith.constant 0 : index
    %33 = vector.load %arg9[%c0_21, %c0_22, %c0_23, %c0_24, %c0_25] : memref<1x1x2x16x1xf32, #tpu.memory_space<vmem>>, vector<1x1x1x16x1xf32>
    %34 = vector.shape_cast %33 : vector<1x1x1x16x1xf32> to vector<16x1xf32>
    %35 = vector.shape_cast %28 : vector<16x1xf32> to vector<1x1x1x16x1xf32>
    tpu.vector_store %arg9[%c0_21, %c0_22, %c0_23, %c0_24, %c0_25], %35 {strides = array<i32>} : memref<1x1x2x16x1xf32, #tpu.memory_space<vmem>>, vector<1x1x1x16x1xf32>,
    %c0_26 = arith.constant 0 : index
    %c0_27 = arith.constant 0 : index
    %c1 = arith.constant 1 : index
    %c0_28 = arith.constant 0 : index
    %c0_29 = arith.constant 0 : index
    %36 = vector.load %arg9[%c0_26, %c0_27, %c1, %c0_28, %c0_29] : memref<1x1x2x16x1xf32, #tpu.memory_space<vmem>>, vector<1x1x1x16x1xf32>
    %37 = vector.shape_cast %36 : vector<1x1x1x16x1xf32> to vector<16x1xf32>
    %38 = vector.shape_cast %32 : vector<16x1xf32> to vector<1x1x1x16x1xf32>
    tpu.vector_store %arg9[%c0_26, %c0_27, %c1, %c0_28, %c0_29], %38 {strides = array<i32>} : memref<1x1x2x16x1xf32, #tpu.memory_space<vmem>>, vector<1x1x1x16x1xf32>,
    return
  }
  func.func @transform_0(%arg0: i32, %arg1: i32) -> (i32, i32, i32) {
    %c0_i32 = arith.constant 0 : i32
    %c0_i32_0 = arith.constant 0 : i32
    return %arg0, %c0_i32, %arg1 : i32, i32, i32
  }
  func.func @transform_1(%arg0: i32, %arg1: i32) -> (i32, i32) {
    %c0_i32 = arith.constant 0 : i32
    %c0_i32_0 = arith.constant 0 : i32
    %c0_i32_1 = arith.constant 0 : i32
    return %c0_i32, %c0_i32_0 : i32, i32
  }
  func.func @transform_2(%arg0: i32, %arg1: i32) -> (i32, i32) {
    %c0_i32 = arith.constant 0 : i32
    %c0_i32_0 = arith.constant 0 : i32
    %c0_i32_1 = arith.constant 0 : i32
    return %c0_i32, %c0_i32_0 : i32, i32
  }
  func.func @transform_3(%arg0: i32, %arg1: i32) -> (i32, i32) {
    %c0_i32 = arith.constant 0 : i32
    %c0_i32_0 = arith.constant 0 : i32
    %c0_i32_1 = arith.constant 0 : i32
    return %c0_i32, %c0_i32_0 : i32, i32
  }
  func.func @transform_4(%arg0: i32, %arg1: i32) -> (i32, i32) {
    %c0_i32 = arith.constant 0 : i32
    %c0_i32_0 = arith.constant 0 : i32
    %c0_i32_1 = arith.constant 0 : i32
    return %c0_i32, %c0_i32_0 : i32, i32
  }
  func.func @transform_5(%arg0: i32, %arg1: i32) -> (i32, i32, i32) {
    %c0_i32 = arith.constant 0 : i32
    %c0_i32_0 = arith.constant 0 : i32
    return %arg0, %c0_i32, %arg1 : i32, i32, i32
  }
  func.func @transform_6(%arg0: i32, %arg1: i32) -> (i32, i32, i32) {
    %c0_i32 = arith.constant 0 : i32
    %c0_i32_0 = arith.constant 0 : i32
    return %arg0, %c0_i32, %arg1 : i32, i32, i32
  }
  func.func @transform_7(%arg0: i32, %arg1: i32) -> (i32, i32, i32, i32, i32) {
    %c0_i32 = arith.constant 0 : i32
    %c0_i32_0 = arith.constant 0 : i32
    %c0_i32_1 = arith.constant 0 : i32
    %c0_i32_2 = arith.constant 0 : i32
    return %arg0, %arg1, %c0_i32, %c0_i32_0, %c0_i32_1 : i32, i32, i32, i32, i32
  }
}

</mosaic_0001>

<llo_original>
// kernel: mlp_encoder_forward.3
$region0: #{mlp_encoder_forward.3}
  #allocation0 [shape = 'u32[]', space=smem, size = 0x4, offset = 0x4, fixed_abs, tag = 'smem constant byte address 0x4 - core index']
  #allocation1 [shape = 'u32[72,128]{1,0:T(1,128)}', space=vmem, size = 0x9000, scoped, tag = 'internal scratch']
  %s0 = inlined_call_operand.vmem [shape: f32[2,4,16], index: 0, kind: input, shape index: {}]
  %s1 = inlined_call_operand.vmem [shape: bf16[8,4], index: 1, kind: input, shape index: {}]
  %s2 = inlined_call_operand.vmem [shape: f32[8,1], index: 2, kind: input, shape index: {}]
  %s3 = inlined_call_operand.vmem [shape: bf16[2,8,16], index: 3, kind: output, shape index: {0}]
  %s4 = inlined_call_operand.vmem [shape: f32[2,1,2,8,1], index: 4, kind: output, shape index: {1}]
  %5 = xla_tuple %s3, %s4
  %s6 = sld [smem:[#allocation0]]
  $region53: #{mlp_encoder_forward.3} parent=0
    _
  %s8 = ssub.s32 1, %s6
  %s9 = scalar_select 0, %s8, %s6
  loop: start=0, step=1, limit=4
  $region2: #{mlp_encoder_forward.3} parent=0 // loop_pre_header
    _
  $region3: #{mlp_encoder_forward.3} parent=0 // loop_header
    %s11 = sphi 0, %s15
    %p12 = scmp.ge.s32.totalorder %s11, 4
    %s18 = sphi 0, %s30
    %s19 = sphi 0, %s26
    %s20 = sphi 0, %s18
    %s21 = sphi 0, %s19
    %s22 = sphi 0, %s20
    %s23 = sphi 0, %s21
    %s35 = sphi 0, %s37
    %s38 = sphi 0, %s35
    %s39 = sphi 0, %s38
    %s55 = sphi 0, %s39
    %s59 = sphi 0, %s59
    %s61 = sphi 0, %s59
    %s62 = sphi 0, %s61
    %s76 = sphi 0, %s62
    %s80 = sphi 0, %s80
    %s82 = sphi 0, %s80
    %s83 = sphi 0, %s82
    %s97 = sphi 0, %s83
    %s105 = sphi 0, %s107
    %s108 = sphi 0, %s105
    %s109 = sphi 0, %s108
    %s125 = sphi 0, %s109
    %s133 = sphi 0, %s135
    %s136 = sphi 0, %s133
    %s137 = sphi 0, %s136
    %s153 = sphi 0, %s137
  $region4: #{mlp_encoder_forward.3} parent=0 // loop_header_branch
    %14 = sbr.rel (%p12) target = $region8
  $region5: #{mlp_encoder_forward.3} parent=0 // loop_body
    %s16 = ssub.s32 %s11, 1
    %s17 = ssub.s32 %s11, 2
    %s24 = sadd.s32 1, %s19
    %p25 = scmp.ge.s32.totalorder %s24, 1
    %s26 = scalar_select %p25, 0, %s24
    %s27 = sadd.s32 1, %s18
    %s28 = scalar_select %p25, %s27, %s18
    %p29 = scmp.ge.s32.totalorder %s28, 2
    %s30 = scalar_select %p29, 0, %s28
    %s31 = ssub.s32 %s18, %s30
    %s32 = ssub.s32 %s19, %s26
    %s33 = sor.u32 %s31, %s32
    %p34 = scmp.eq.s32.totalorder %s33, 0
    %s36 = sadd.s32 %s35, 1
    %s37 = scalar_select %p34, %s35, %s36
    %p40 = pneg %p34
    %p41 = scmp.eq.s32.totalorder %s11, 1
    %p42 = por %p40, %p41
    %p43 = scmp.ne.s32.totalorder %s35, %s38
    %p44 = scmp.eq.s32.totalorder %s11, 0
    %p45 = por %p43, %p44
    %p46 = scmp.ne.s32.totalorder %s35, %s38
    %p47 = scmp.eq.s32.totalorder %s16, 1
    %p48 = por %p46, %p47
    %p49 = scmp.ne.s32.totalorder %s38, %s39
    %p50 = scmp.eq.s32.totalorder %s16, 0
    %p51 = por %p49, %p50
    %p52 = scmp.ne.s32.totalorder %s38, %s39
    %p53 = scmp.eq.s32.totalorder %s17, 1
    %p54 = por %p52, %p53
    %p56 = scmp.ne.s32.totalorder %s39, %s55
    %p57 = scmp.eq.s32.totalorder %s17, 0
    %p58 = por %p56, %p57
    %s60 = sadd.s32 %s59, 1
    %p63 = scmp.eq.s32.totalorder %s11, 1
    %p64 = scmp.ne.s32.totalorder %s59, %s61
    %p65 = scmp.eq.s32.totalorder %s11, 0
    %p66 = por %p64, %p65
    %p67 = scmp.ne.s32.totalorder %s59, %s61
    %p68 = scmp.eq.s32.totalorder %s16, 1
    %p69 = por %p67, %p68
    %p70 = scmp.ne.s32.totalorder %s61, %s62
    %p71 = scmp.eq.s32.totalorder %s16, 0
    %p72 = por %p70, %p71
    %p73 = scmp.ne.s32.totalorder %s61, %s62
    %p74 = scmp.eq.s32.totalorder %s17, 1
    %p75 = por %p73, %p74
    %p77 = scmp.ne.s32.totalorder %s62, %s76
    %p78 = scmp.eq.s32.totalorder %s17, 0
    %p79 = por %p77, %p78
    %s81 = sadd.s32 %s80, 1
    %p84 = scmp.eq.s32.totalorder %s11, 1
    %p85 = scmp.ne.s32.totalorder %s80, %s82
    %p86 = scmp.eq.s32.totalorder %s11, 0
    %p87 = por %p85, %p86
    %p88 = scmp.ne.s32.totalorder %s80, %s82
    %p89 = scmp.eq.s32.totalorder %s16, 1
    %p90 = por %p88, %p89
    %p91 = scmp.ne.s32.totalorder %s82, %s83
    %p92 = scmp.eq.s32.totalorder %s16, 0
    %p93 = por %p91, %p92
    %p94 = scmp.ne.s32.totalorder %s82, %s83
    %p95 = scmp.eq.s32.totalorder %s17, 1
    %p96 = por %p94, %p95
    %p98 = scmp.ne.s32.totalorder %s83, %s97
    %p99 = scmp.eq.s32.totalorder %s17, 0
    %p100 = por %p98, %p99
    %s101 = ssub.s32 %s18, %s30
    %s102 = ssub.s32 %s19, %s26
    %s103 = sor.u32 %s101, %s102
    %p104 = scmp.eq.s32.totalorder %s103, 0
    %s106 = sadd.s32 %s105, 1
    %s107 = scalar_select %p104, %s105, %s106
    %p110 = pneg %p104
    %p111 = scmp.eq.s32.totalorder %s11, 1
    %p112 = por %p110, %p111
    %p113 = scmp.ne.s32.totalorder %s105, %s108
    %p114 = scmp.eq.s32.totalorder %s11, 0
    %p115 = por %p113, %p114
    %p116 = scmp.ne.s32.totalorder %s105, %s108
    %p117 = scmp.eq.s32.totalorder %s16, 1
    %p118 = por %p116, %p117
    %p119 = scmp.ne.s32.totalorder %s108, %s109
    %p120 = scmp.eq.s32.totalorder %s16, 0
    %p121 = por %p119, %p120
    %p122 = scmp.ne.s32.totalorder %s108, %s109
    %p123 = scmp.eq.s32.totalorder %s17, 1
    %p124 = por %p122, %p123
    %p126 = scmp.ne.s32.totalorder %s109, %s125
    %p127 = scmp.eq.s32.totalorder %s17, 0
    %p128 = por %p126, %p127
    %s129 = ssub.s32 %s18, %s30
    %s130 = ssub.s32 %s19, %s26
    %s131 = sor.u32 %s129, %s130
    %p132 = scmp.eq.s32.totalorder %s131, 0
    %s134 = sadd.s32 %s133, 1
    %s135 = scalar_select %p132, %s133, %s134
    %p138 = pneg %p132
    %p139 = scmp.eq.s32.totalorder %s11, 1
    %p140 = por %p138, %p139
    %p141 = scmp.ne.s32.totalorder %s133, %s136
    %p142 = scmp.eq.s32.totalorder %s11, 0
    %p143 = por %p141, %p142
    %p144 = scmp.ne.s32.totalorder %s133, %s136
    %p145 = scmp.eq.s32.totalorder %s16, 1
    %p146 = por %p144, %p145
    %p147 = scmp.ne.s32.totalorder %s136, %s137
    %p148 = scmp.eq.s32.totalorder %s16, 0
    %p149 = por %p147, %p148
    %p150 = scmp.ne.s32.totalorder %s136, %s137
    %p151 = scmp.eq.s32.totalorder %s17, 1
    %p152 = por %p150, %p151
    %p154 = scmp.ne.s32.totalorder %s137, %s153
    %p155 = scmp.eq.s32.totalorder %s17, 0
    %p156 = por %p154, %p155
    %p157 = scmp.le.s32.totalorder 1, %s11
    %p158 = scmp.lt.s32.totalorder %s11, 3
    %p159 = pnand %p157, %p158
    %p160 = pneg %p159
    // Predicated region
    $region9: #{mlp_encoder_forward.3} parent=5 // pred_check
      _
    $region10: #{mlp_encoder_forward.3} parent=5 // pred_check_branch
      %162 = sbr.rel (%p159) target = $region12
    $region11: #{mlp_encoder_forward.3} parent=5 // pred_region
      %s163 = ssub.s32 %s11, 1
      // Predicated region
      $region13: #{mlp_encoder_forward.3} parent=11 // pred_check
        %p164 = pneg %p72
      $region14: #{mlp_encoder_forward.3} parent=11 // pred_check_branch
        %166 = sbr.rel (%p164) target = $region16
      $region15: #{mlp_encoder_forward.3} parent=11 // pred_region
        _
      $region16: #{mlp_encoder_forward.3} parent=11 // pred_fallthru
        _
      // Predicated region
      $region17: #{mlp_encoder_forward.3} parent=11 // pred_check
        %p167 = pneg %p93
      $region18: #{mlp_encoder_forward.3} parent=11 // pred_check_branch
        %169 = sbr.rel (%p167) target = $region20
      $region19: #{mlp_encoder_forward.3} parent=11 // pred_region
        _
      $region20: #{mlp_encoder_forward.3} parent=11 // pred_fallthru
        _
    $region12: #{mlp_encoder_forward.3} parent=5 // pred_fallthru
      _
    %p170 = scmp.lt.s32.totalorder %s11, 2
    // Predicated region
    $region21: #{mlp_encoder_forward.3} parent=5 // pred_check
      %p171 = pneg %p170
    $region22: #{mlp_encoder_forward.3} parent=5 // pred_check_branch
      %173 = sbr.rel (%p171) target = $region24
    $region23: #{mlp_encoder_forward.3} parent=5 // pred_region
      // Predicated region
      $region25: #{mlp_encoder_forward.3} parent=23 // pred_check
        %p174 = pneg %p45
      $region26: #{mlp_encoder_forward.3} parent=23 // pred_check_branch
        %176 = sbr.rel (%p174) target = $region28
      $region27: #{mlp_encoder_forward.3} parent=23 // pred_region
        %p177 = scmp.lt.s32.totalorder %s18, 1
        %s178 = scalar_select %p177, %s18, 1
        %p179 = scmp.lt.s32.totalorder %s19, 0
        %s180 = scalar_select %p179, %s19, 0
        %s181 = sadd.s32 %s180, %s178
        %s182 = smul.addr %s181, 4
        %s183 = scalar_lea.vmem %s0, %s182
      $region28: #{mlp_encoder_forward.3} parent=23 // pred_fallthru
        _
    $region24: #{mlp_encoder_forward.3} parent=5 // pred_fallthru
      _
    %p184 = scmp.le.s32.totalorder 1, %s11
    %p185 = scmp.lt.s32.totalorder %s11, 3
    %p186 = pnand %p184, %p185
    %p187 = pneg %p186
    // Predicated region
    $region29: #{mlp_encoder_forward.3} parent=5 // pred_check
      _
    $region30: #{mlp_encoder_forward.3} parent=5 // pred_check_branch
      %189 = sbr.rel (%p186) target = $region32
    $region31: #{mlp_encoder_forward.3} parent=5 // pred_region
      %s190 = ssub.s32 %s11, 1
      %p191 = scmp.lt.s32.totalorder %s20, 1
      %s192 = scalar_select %p191, %s20, 1
      %p193 = scmp.lt.s32.totalorder %s21, 0
      %s194 = scalar_select %p193, %s21, 0
      %s195 = sadd.s32 %s194, %s192
      %s196 = smul.addr %s195, 4
      %s197 = scalar_lea.vmem %s0, %s196
      %p198 = pneg %p51
      %p199 = pneg %p48
      %p200 = pneg %p72
      %p201 = pneg %p69
      %p202 = pneg %p93
      %p203 = pneg %p90
      %p204 = pneg %p121
      %p205 = pneg %p118
      %p206 = scmp.lt.s32.totalorder %s20, 1
      %s207 = scalar_select %p206, %s20, 1
      %p208 = scmp.lt.s32.totalorder %s21, 0
      %s209 = scalar_select %p208, %s21, 0
      %s210 = sadd.s32 %s209, %s207
      %s211 = smul.addr %s210, 4
      %s212 = scalar_lea.vmem %s3, %s211
      %p213 = pneg %p149
      %p214 = pneg %p146
      %p215 = scmp.lt.s32.totalorder %s20, 1
      %s216 = scalar_select %p215, %s20, 1
      %p217 = scmp.lt.s32.totalorder %s21, 0
      %s218 = scalar_select %p217, %s21, 0
      %s219 = smul.addr %s218, 2
      %s220 = smul.addr %s216, 2
      %s221 = sadd.s32 %s219, %s220
      %s222 = smul.addr %s221, 8
      %s223 = scalar_lea.vmem %s4, %s222
      %p224 = scmp.lt.s32.totalorder %s20, 1
      %s225 = scalar_select %p224, %s20, 1
      %p226 = scmp.lt.s32.totalorder %s21, 0
      %s227 = scalar_select %p226, %s21, 0
      %s228 = sadd.s32 %s227, %s225
      %s229 = smul.addr %s228, 4
      %s230 = scalar_lea.vmem %s0, %s229
      %p231 = scmp.lt.s32.totalorder %s20, 1
      %s232 = scalar_select %p231, %s20, 1
      %p233 = scmp.lt.s32.totalorder %s21, 0
      %s234 = scalar_select %p233, %s21, 0
      %s235 = sadd.s32 %s234, %s232
      %s236 = smul.addr %s235, 4
      %s237 = scalar_lea.vmem %s3, %s236
      %p238 = scmp.lt.s32.totalorder %s20, 1
      %s239 = scalar_select %p238, %s20, 1
      %p240 = scmp.lt.s32.totalorder %s21, 0
      %s241 = scalar_select %p240, %s21, 0
      %s242 = smul.addr %s241, 2
      %s243 = smul.addr %s239, 2
      %s244 = sadd.s32 %s242, %s243
      %s245 = smul.addr %s244, 8
      %s246 = scalar_lea.vmem %s4, %s245
      %v248 = vld [vmem:[%s1] sm:$0xf]
      %v249 = vld [vmem:[%s2] sm:$0xff]
      %v250 = vld [vmem:[%s230] sm:$0xf]
      %v251 = vpack.c.bf16 %v250, %v250
      %253 = vset.pattern.permute.xlu0 0
      %254 = vperm.xlu0 %253, %v249
      %v255 = vpop.permute.xlu0 %254
      %vm257 = vcmask 31744
      %v259 = vsel %vm257, %v248, 0
      %vm261 = vcmask 1041408
      %v263 = vsel %vm261, %v251, 0
      %265 = vmatpush.bf16.msra.mxu0 0
      %266 = vmatpush.bf16.msra.mxu0 0
      %267 = vmatpush.bf16.msra.mxu0 0
      %268 = vmatpush.bf16.msra.mxu0 0
      %269 = vmatpush.bf16.msra.mxu0 0
      %270 = vmatpush.bf16.msra.mxu0 0
      %271 = vmatpush.bf16.msra.mxu0 0
      %272 = vmatpush.bf16.msra.mxu0 %v263
      %273 = vmatmul.bf16.gmra.mxu0 %v259
      %v274 = vpop.f32.mrf.mxu0
      %v275 = vadd.f32 %v255, %v274
      %v276 = vpop.f32.mrf.mxu0
      %277 = vdwg.mxu0
      %v278 = vmax.f32 %v275, 0.0
      %v279 = vpack.c.bf16 %v278, %v278
      %vm280 = vcmask 125952
      %281 = vst.msk [vmem:[%s237] sm:$0xf] %vm280, %v279
      %vm282 = vcmask 130048
      %v283 = vsel %vm282, %v278, 0.0
      %284 = vadd.xlane.f32.xlu0 %v283
      %v285 = vpop.xlane.xlu0 %284
      %v286 = vadd.f32 %v285, 0.0
      %v287 = vmul.f32 %v278, %v278
      %v288 = vsel %vm282, %v287, 0.0
      %289 = vadd.xlane.f32.xlu0 %v288
      %v290 = vpop.xlane.xlu0 %289
      %v291 = vadd.f32 %v290, 0.0
      %vm292 = vcmask 7168
      %293 = vst.msk [vmem:[%s246] sm:$0xff] %vm292, %v286
      %s294 = scalar_lea.vmem %s246, 8
      %295 = vst.msk [vmem:[%s294] sm:$0xff] %vm292, %v291
      %p296 = scmp.lt.s32.totalorder %s20, 1
      %s297 = scalar_select %p296, %s20, 1
      %p298 = scmp.lt.s32.totalorder %s21, 0
      %s299 = scalar_select %p298, %s21, 0
      %s300 = sadd.s32 %s299, %s297
      %s301 = smul.addr %s300, 4
      %s302 = scalar_lea.vmem %s3, %s301
      %p303 = scmp.lt.s32.totalorder %s20, 1
      %s304 = scalar_select %p303, %s20, 1
      %p305 = scmp.lt.s32.totalorder %s21, 0
      %s306 = scalar_select %p305, %s21, 0
      %s307 = smul.addr %s306, 2
      %s308 = smul.addr %s304, 2
      %s309 = sadd.s32 %s307, %s308
      %s310 = smul.addr %s309, 8
      %s311 = scalar_lea.vmem %s4, %s310
      // Predicated region
      $region33: #{mlp_encoder_forward.3} parent=31 // pred_check
        %p312 = pneg %p118
      $region34: #{mlp_encoder_forward.3} parent=31 // pred_check_branch
        %314 = sbr.rel (%p312) target = $region36
      $region35: #{mlp_encoder_forward.3} parent=31 // pred_region
        _
      $region36: #{mlp_encoder_forward.3} parent=31 // pred_fallthru
        _
      // Predicated region
      $region37: #{mlp_encoder_forward.3} parent=31 // pred_check
        %p315 = pneg %p146
      $region38: #{mlp_encoder_forward.3} parent=31 // pred_check_branch
        %317 = sbr.rel (%p315) target = $region40
      $region39: #{mlp_encoder_forward.3} parent=31 // pred_region
        _
      $region40: #{mlp_encoder_forward.3} parent=31 // pred_fallthru
        _
    $region32: #{mlp_encoder_forward.3} parent=5 // pred_fallthru
      _
    %p318 = scmp.le.s32.totalorder 2, %s11
    // Predicated region
    $region41: #{mlp_encoder_forward.3} parent=5 // pred_check
      %p319 = pneg %p318
    $region42: #{mlp_encoder_forward.3} parent=5 // pred_check_branch
      %321 = sbr.rel (%p319) target = $region44
    $region43: #{mlp_encoder_forward.3} parent=5 // pred_region
      %s322 = ssub.s32 %s11, 2
      // Predicated region
      $region45: #{mlp_encoder_forward.3} parent=43 // pred_check
        %p323 = pneg %p124
      $region46: #{mlp_encoder_forward.3} parent=43 // pred_check_branch
        %325 = sbr.rel (%p323) target = $region48
      $region47: #{mlp_encoder_forward.3} parent=43 // pred_region
        %p326 = scmp.lt.s32.totalorder %s22, 1
        %s327 = scalar_select %p326, %s22, 1
        %p328 = scmp.lt.s32.totalorder %s23, 0
        %s329 = scalar_select %p328, %s23, 0
        %s330 = sadd.s32 %s329, %s327
        %s331 = smul.addr %s330, 4
        %s332 = scalar_lea.vmem %s3, %s331
      $region48: #{mlp_encoder_forward.3} parent=43 // pred_fallthru
        _
      // Predicated region
      $region49: #{mlp_encoder_forward.3} parent=43 // pred_check
        %p333 = pneg %p152
      $region50: #{mlp_encoder_forward.3} parent=43 // pred_check_branch
        %335 = sbr.rel (%p333) target = $region52
      $region51: #{mlp_encoder_forward.3} parent=43 // pred_region
        %p336 = scmp.lt.s32.totalorder %s22, 1
        %s337 = scalar_select %p336, %s22, 1
        %p338 = scmp.lt.s32.totalorder %s23, 0
        %s339 = scalar_select %p338, %s23, 0
        %s340 = smul.addr %s339, 2
        %s341 = smul.addr %s337, 2
        %s342 = sadd.s32 %s340, %s341
        %s343 = smul.addr %s342, 8
        %s344 = scalar_lea.vmem %s4, %s343
      $region52: #{mlp_encoder_forward.3} parent=43 // pred_fallthru
        _
    $region44: #{mlp_encoder_forward.3} parent=5 // pred_fallthru
      _
  $region6: #{mlp_encoder_forward.3} parent=0 // loop_footer
    %s15 = sadd.s32 1, %s11
  $region7: #{mlp_encoder_forward.3} parent=0 // loop_footer_branch
    %10 = sbr.rel target = $region3
  $region8: #{mlp_encoder_forward.3} parent=0 // loop_exit
    _

// kernel: mlp_encoder_forward.4
$region0: #{mlp_encoder_forward.4}
  #allocation0 [shape = 'u32[]', space=smem, size = 0x4, offset = 0x4, fixed_abs, tag = 'smem constant byte address 0x4 - core index']
  #allocation1 [shape = 'u32[72,128]{1,0:T(1,128)}', space=vmem, size = 0x9000, scoped, tag = 'internal scratch']
  %s0 = inlined_call_operand.vmem [shape: bf16[2,8,16], index: 0, kind: input, shape index: {}]
  %s1 = inlined_call_operand.vmem [shape: f32[8,1], index: 1, kind: input, shape index: {}]
  %s2 = inlined_call_operand.vmem [shape: f32[8,1], index: 2, kind: input, shape index: {}]
  %s3 = inlined_call_operand.vmem [shape: bf16[16,8], index: 3, kind: input, shape index: {}]
  %s4 = inlined_call_operand.vmem [shape: f32[16,1], index: 4, kind: input, shape index: {}]
  %s5 = inlined_call_operand.hbm [shape: f32[2,8,16], index: 5, kind: output, shape index: {0}]
  %s6 = inlined_call_operand.vmem [shape: bf16[2,16,16], index: 6, kind: output, shape index: {1}]
  %s7 = inlined_call_operand.vmem [shape: f32[2,1,2,16,1], index: 7, kind: output, shape index: {2}]
  %8 = xla_tuple %s5, %s6, %s7
  %s9 = sld [smem:[#allocation0]]
  $region69: #{mlp_encoder_forward.4} parent=0
    _
  %s11 = ssub.s32 1, %s9
  %s12 = scalar_select 0, %s11, %s9
  $region1: #{mlp_encoder_forward.4} parent=0
    #allocation2 [shape = 'u8[8192]{0}', space=vmem, size = 0x2000, scoped, tag = 'output window, operand 0']
    #allocation3 [shape = 's32[2]{0}', space=sflag, size = 0x8, scoped, tag = 'scoped memory for mlp_encoder_forward.4']
    %13 = vsyncpa [#allocation3], 0
    %s14 = scalar_lea.sflag [#allocation3], 1
    %15 = vsyncpa %s14, 0
    loop: start=0, step=1, limit=4
    $region2: #{mlp_encoder_forward.4} parent=1 // loop_pre_header
      _
    $region3: #{mlp_encoder_forward.4} parent=1 // loop_header
      %s17 = sphi 0, %s21
      %p18 = scmp.ge.s32.totalorder %s17, 4
      %s24 = sphi 0, %s36
      %s25 = sphi 0, %s32
      %s26 = sphi 0, %s24
      %s27 = sphi 0, %s25
      %s28 = sphi 0, %s26
      %s29 = sphi 0, %s27
      %s41 = sphi 0, %s43
      %s44 = sphi 0, %s41
      %s45 = sphi 0, %s44
      %s61 = sphi 0, %s45
      %s65 = sphi 0, %s65
      %s67 = sphi 0, %s65
      %s68 = sphi 0, %s67
      %s82 = sphi 0, %s68
      %s86 = sphi 0, %s86
      %s88 = sphi 0, %s86
      %s89 = sphi 0, %s88
      %s103 = sphi 0, %s89
      %s107 = sphi 0, %s107
      %s109 = sphi 0, %s107
      %s110 = sphi 0, %s109
      %s124 = sphi 0, %s110
      %s128 = sphi 0, %s128
      %s130 = sphi 0, %s128
      %s131 = sphi 0, %s130
      %s145 = sphi 0, %s131
      %s153 = sphi 0, %s155
      %s156 = sphi 0, %s153
      %s157 = sphi 0, %s156
      %s173 = sphi 0, %s157
      %s181 = sphi 0, %s183
      %s184 = sphi 0, %s181
      %s185 = sphi 0, %s184
      %s201 = sphi 0, %s185
      %s209 = sphi 0, %s211
      %s212 = sphi 0, %s209
      %s213 = sphi 0, %s212
      %s229 = sphi 0, %s213
    $region4: #{mlp_encoder_forward.4} parent=1 // loop_header_branch
      %20 = sbr.rel (%p18) target = $region8
    $region5: #{mlp_encoder_forward.4} parent=1 // loop_body
      %s22 = ssub.s32 %s17, 1
      %s23 = ssub.s32 %s17, 2
      %s30 = sadd.s32 1, %s25
      %p31 = scmp.ge.s32.totalorder %s30, 1
      %s32 = scalar_select %p31, 0, %s30
      %s33 = sadd.s32 1, %s24
      %s34 = scalar_select %p31, %s33, %s24
      %p35 = scmp.ge.s32.totalorder %s34, 2
      %s36 = scalar_select %p35, 0, %s34
      %s37 = ssub.s32 %s24, %s36
      %s38 = ssub.s32 %s25, %s32
      %s39 = sor.u32 %s37, %s38
      %p40 = scmp.eq.s32.totalorder %s39, 0
      %s42 = sadd.s32 %s41, 1
      %s43 = scalar_select %p40, %s41, %s42
      %p46 = pneg %p40
      %p47 = scmp.eq.s32.totalorder %s17, 1
      %p48 = por %p46, %p47
      %p49 = scmp.ne.s32.totalorder %s41, %s44
      %p50 = scmp.eq.s32.totalorder %s17, 0
      %p51 = por %p49, %p50
      %p52 = scmp.ne.s32.totalorder %s41, %s44
      %p53 = scmp.eq.s32.totalorder %s22, 1
      %p54 = por %p52, %p53
      %p55 = scmp.ne.s32.totalorder %s44, %s45
      %p56 = scmp.eq.s32.totalorder %s22, 0
      %p57 = por %p55, %p56
      %p58 = scmp.ne.s32.totalorder %s44, %s45
      %p59 = scmp.eq.s32.totalorder %s23, 1
      %p60 = por %p58, %p59
      %p62 = scmp.ne.s32.totalorder %s45, %s61
      %p63 = scmp.eq.s32.totalorder %s23, 0
      %p64 = por %p62, %p63
      %s66 = sadd.s32 %s65, 1
      %p69 = scmp.eq.s32.totalorder %s17, 1
      %p70 = scmp.ne.s32.totalorder %s65, %s67
      %p71 = scmp.eq.s32.totalorder %s17, 0
      %p72 = por %p70, %p71
      %p73 = scmp.ne.s32.totalorder %s65, %s67
      %p74 = scmp.eq.s32.totalorder %s22, 1
      %p75 = por %p73, %p74
      %p76 = scmp.ne.s32.totalorder %s67, %s68
      %p77 = scmp.eq.s32.totalorder %s22, 0
      %p78 = por %p76, %p77
      %p79 = scmp.ne.s32.totalorder %s67, %s68
      %p80 = scmp.eq.s32.totalorder %s23, 1
      %p81 = por %p79, %p80
      %p83 = scmp.ne.s32.totalorder %s68, %s82
      %p84 = scmp.eq.s32.totalorder %s23, 0
      %p85 = por %p83, %p84
      %s87 = sadd.s32 %s86, 1
      %p90 = scmp.eq.s32.totalorder %s17, 1
      %p91 = scmp.ne.s32.totalorder %s86, %s88
      %p92 = scmp.eq.s32.totalorder %s17, 0
      %p93 = por %p91, %p92
      %p94 = scmp.ne.s32.totalorder %s86, %s88
      %p95 = scmp.eq.s32.totalorder %s22, 1
      %p96 = por %p94, %p95
      %p97 = scmp.ne.s32.totalorder %s88, %s89
      %p98 = scmp.eq.s32.totalorder %s22, 0
      %p99 = por %p97, %p98
      %p100 = scmp.ne.s32.totalorder %s88, %s89
      %p101 = scmp.eq.s32.totalorder %s23, 1
      %p102 = por %p100, %p101
      %p104 = scmp.ne.s32.totalorder %s89, %s103
      %p105 = scmp.eq.s32.totalorder %s23, 0
      %p106 = por %p104, %p105
      %s108 = sadd.s32 %s107, 1
      %p111 = scmp.eq.s32.totalorder %s17, 1
      %p112 = scmp.ne.s32.totalorder %s107, %s109
      %p113 = scmp.eq.s32.totalorder %s17, 0
      %p114 = por %p112, %p113
      %p115 = scmp.ne.s32.totalorder %s107, %s109
      %p116 = scmp.eq.s32.totalorder %s22, 1
      %p117 = por %p115, %p116
      %p118 = scmp.ne.s32.totalorder %s109, %s110
      %p119 = scmp.eq.s32.totalorder %s22, 0
      %p120 = por %p118, %p119
      %p121 = scmp.ne.s32.totalorder %s109, %s110
      %p122 = scmp.eq.s32.totalorder %s23, 1
      %p123 = por %p121, %p122
      %p125 = scmp.ne.s32.totalorder %s110, %s124
      %p126 = scmp.eq.s32.totalorder %s23, 0
      %p127 = por %p125, %p126
      %s129 = sadd.s32 %s128, 1
      %p132 = scmp.eq.s32.totalorder %s17, 1
      %p133 = scmp.ne.s32.totalorder %s128, %s130
      %p134 = scmp.eq.s32.totalorder %s17, 0
      %p135 = por %p133, %p134
      %p136 = scmp.ne.s32.totalorder %s128, %s130
      %p137 = scmp.eq.s32.totalorder %s22, 1
      %p138 = por %p136, %p137
      %p139 = scmp.ne.s32.totalorder %s130, %s131
      %p140 = scmp.eq.s32.totalorder %s22, 0
      %p141 = por %p139, %p140
      %p142 = scmp.ne.s32.totalorder %s130, %s131
      %p143 = scmp.eq.s32.totalorder %s23, 1
      %p144 = por %p142, %p143
      %p146 = scmp.ne.s32.totalorder %s131, %s145
      %p147 = scmp.eq.s32.totalorder %s23, 0
      %p148 = por %p146, %p147
      %s149 = ssub.s32 %s24, %s36
      %s150 = ssub.s32 %s25, %s32
      %s151 = sor.u32 %s149, %s150
      %p152 = scmp.eq.s32.totalorder %s151, 0
      %s154 = sadd.s32 %s153, 1
      %s155 = scalar_select %p152, %s153, %s154
      %p158 = pneg %p152
      %p159 = scmp.eq.s32.totalorder %s17, 1
      %p160 = por %p158, %p159
      %p161 = scmp.ne.s32.totalorder %s153, %s156
      %p162 = scmp.eq.s32.totalorder %s17, 0
      %p163 = por %p161, %p162
      %p164 = scmp.ne.s32.totalorder %s153, %s156
      %p165 = scmp.eq.s32.totalorder %s22, 1
      %p166 = por %p164, %p165
      %p167 = scmp.ne.s32.totalorder %s156, %s157
      %p168 = scmp.eq.s32.totalorder %s22, 0
      %p169 = por %p167, %p168
      %p170 = scmp.ne.s32.totalorder %s156, %s157
      %p171 = scmp.eq.s32.totalorder %s23, 1
      %p172 = por %p170, %p171
      %p174 = scmp.ne.s32.totalorder %s157, %s173
      %p175 = scmp.eq.s32.totalorder %s23, 0
      %p176 = por %p174, %p175
      %s177 = ssub.s32 %s24, %s36
      %s178 = ssub.s32 %s25, %s32
      %s179 = sor.u32 %s177, %s178
      %p180 = scmp.eq.s32.totalorder %s179, 0
      %s182 = sadd.s32 %s181, 1
      %s183 = scalar_select %p180, %s181, %s182
      %p186 = pneg %p180
      %p187 = scmp.eq.s32.totalorder %s17, 1
      %p188 = por %p186, %p187
      %p189 = scmp.ne.s32.totalorder %s181, %s184
      %p190 = scmp.eq.s32.totalorder %s17, 0
      %p191 = por %p189, %p190
      %p192 = scmp.ne.s32.totalorder %s181, %s184
      %p193 = scmp.eq.s32.totalorder %s22, 1
      %p194 = por %p192, %p193
      %p195 = scmp.ne.s32.totalorder %s184, %s185
      %p196 = scmp.eq.s32.totalorder %s22, 0
      %p197 = por %p195, %p196
      %p198 = scmp.ne.s32.totalorder %s184, %s185
      %p199 = scmp.eq.s32.totalorder %s23, 1
      %p200 = por %p198, %p199
      %p202 = scmp.ne.s32.totalorder %s185, %s201
      %p203 = scmp.eq.s32.totalorder %s23, 0
      %p204 = por %p202, %p203
      %s205 = ssub.s32 %s24, %s36
      %s206 = ssub.s32 %s25, %s32
      %s207 = sor.u32 %s205, %s206
      %p208 = scmp.eq.s32.totalorder %s207, 0
      %s210 = sadd.s32 %s209, 1
      %s211 = scalar_select %p208, %s209, %s210
      %p214 = pneg %p208
      %p215 = scmp.eq.s32.totalorder %s17, 1
      %p216 = por %p214, %p215
      %p217 = scmp.ne.s32.totalorder %s209, %s212
      %p218 = scmp.eq.s32.totalorder %s17, 0
      %p219 = por %p217, %p218
      %p220 = scmp.ne.s32.totalorder %s209, %s212
      %p221 = scmp.eq.s32.totalorder %s22, 1
      %p222 = por %p220, %p221
      %p223 = scmp.ne.s32.totalorder %s212, %s213
      %p224 = scmp.eq.s32.totalorder %s22, 0
      %p225 = por %p223, %p224
      %p226 = scmp.ne.s32.totalorder %s212, %s213
      %p227 = scmp.eq.s32.totalorder %s23, 1
      %p228 = por %p226, %p227
      %p230 = scmp.ne.s32.totalorder %s213, %s229
      %p231 = scmp.eq.s32.totalorder %s23, 0
      %p232 = por %p230, %p231
      %p233 = scmp.le.s32.totalorder 1, %s17
      %p234 = scmp.lt.s32.totalorder %s17, 3
      %p235 = pnand %p233, %p234
      %p236 = pneg %p235
      // Predicated region
      $region9: #{mlp_encoder_forward.4} parent=5 // pred_check
        _
      $region10: #{mlp_encoder_forward.4} parent=5 // pred_check_branch
        %238 = sbr.rel (%p235) target = $region12
      $region11: #{mlp_encoder_forward.4} parent=5 // pred_region
        %s239 = ssub.s32 %s17, 1
        // Predicated region
        $region13: #{mlp_encoder_forward.4} parent=11 // pred_check
          %p240 = pneg %p78
        $region14: #{mlp_encoder_forward.4} parent=11 // pred_check_branch
          %242 = sbr.rel (%p240) target = $region16
        $region15: #{mlp_encoder_forward.4} parent=11 // pred_region
          _
        $region16: #{mlp_encoder_forward.4} parent=11 // pred_fallthru
          _
        // Predicated region
        $region17: #{mlp_encoder_forward.4} parent=11 // pred_check
          %p243 = pneg %p99
        $region18: #{mlp_encoder_forward.4} parent=11 // pred_check_branch
          %245 = sbr.rel (%p243) target = $region20
        $region19: #{mlp_encoder_forward.4} parent=11 // pred_region
          _
        $region20: #{mlp_encoder_forward.4} parent=11 // pred_fallthru
          _
        // Predicated region
        $region21: #{mlp_encoder_forward.4} parent=11 // pred_check
          %p246 = pneg %p120
        $region22: #{mlp_encoder_forward.4} parent=11 // pred_check_branch
          %248 = sbr.rel (%p246) target = $region24
        $region23: #{mlp_encoder_forward.4} parent=11 // pred_region
          _
        $region24: #{mlp_encoder_forward.4} parent=11 // pred_fallthru
          _
        // Predicated region
        $region25: #{mlp_encoder_forward.4} parent=11 // pred_check
          %p249 = pneg %p141
        $region26: #{mlp_encoder_forward.4} parent=11 // pred_check_branch
          %251 = sbr.rel (%p249) target = $region28
        $region27: #{mlp_encoder_forward.4} parent=11 // pred_region
          _
        $region28: #{mlp_encoder_forward.4} parent=11 // pred_fallthru
          _
      $region12: #{mlp_encoder_forward.4} parent=5 // pred_fallthru
        _
      %p252 = scmp.lt.s32.totalorder %s17, 2
      // Predicated region
      $region29: #{mlp_encoder_forward.4} parent=5 // pred_check
        %p253 = pneg %p252
      $region30: #{mlp_encoder_forward.4} parent=5 // pred_check_branch
        %255 = sbr.rel (%p253) target = $region32
      $region31: #{mlp_encoder_forward.4} parent=5 // pred_region
        // Predicated region
        $region33: #{mlp_encoder_forward.4} parent=31 // pred_check
          %p256 = pneg %p51
        $region34: #{mlp_encoder_forward.4} parent=31 // pred_check_branch
          %258 = sbr.rel (%p256) target = $region36
        $region35: #{mlp_encoder_forward.4} parent=31 // pred_region
          %p259 = scmp.lt.s32.totalorder %s24, 1
          %s260 = scalar_select %p259, %s24, 1
          %p261 = scmp.lt.s32.totalorder %s25, 0
          %s262 = scalar_select %p261, %s25, 0
          %s263 = sadd.s32 %s262, %s260
          %s264 = smul.addr %s263, 4
          %s265 = scalar_lea.vmem %s0, %s264
        $region36: #{mlp_encoder_forward.4} parent=31 // pred_fallthru
          _
      $region32: #{mlp_encoder_forward.4} parent=5 // pred_fallthru
        _
      %p266 = scmp.le.s32.totalorder 1, %s17
      %p267 = scmp.lt.s32.totalorder %s17, 3
      %p268 = pnand %p266, %p267
      %p269 = pneg %p268
      // Predicated region
      $region37: #{mlp_encoder_forward.4} parent=5 // pred_check
        _
      $region38: #{mlp_encoder_forward.4} parent=5 // pred_check_branch
        %271 = sbr.rel (%p268) target = $region40
      $region39: #{mlp_encoder_forward.4} parent=5 // pred_region
        %s272 = ssub.s32 %s17, 1
        %p273 = scmp.lt.s32.totalorder %s26, 1
        %s274 = scalar_select %p273, %s26, 1
        %p275 = scmp.lt.s32.totalorder %s27, 0
        %s276 = scalar_select %p275, %s27, 0
        %s277 = sadd.s32 %s276, %s274
        %s278 = smul.addr %s277, 4
        %s279 = scalar_lea.vmem %s0, %s278
        %p280 = pneg %p57
        %p281 = pneg %p54
        %p282 = pneg %p78
        %p283 = pneg %p75
        %p284 = pneg %p99
        %p285 = pneg %p96
        %p286 = pneg %p120
        %p287 = pneg %p117
        %p288 = pneg %p141
        %p289 = pneg %p138
        %p290 = pneg %p169
        %p291 = pneg %p166
        %s292 = sand.u32 %s156, 1
        %s293 = scalar_lea.sflag [#allocation3], %s292
        %s294 = sand.u32 %s156, 1
        %s295 = smul.addr %s294, 8
        %s296 = scalar_lea.vmem [#allocation2], %s295
        %p297 = pneg %p197
        %p298 = pneg %p194
        %p299 = scmp.lt.s32.totalorder %s26, 1
        %s300 = scalar_select %p299, %s26, 1
        %p301 = scmp.lt.s32.totalorder %s27, 0
        %s302 = scalar_select %p301, %s27, 0
        %s303 = smul.addr %s300, 2
        %s304 = sadd.s32 %s302, %s303
        %s305 = smul.addr %s304, 4
        %s306 = scalar_lea.vmem %s6, %s305
        %p307 = pneg %p225
        %p308 = pneg %p222
        %p309 = scmp.lt.s32.totalorder %s26, 1
        %s310 = scalar_select %p309, %s26, 1
        %p311 = scmp.lt.s32.totalorder %s27, 0
        %s312 = scalar_select %p311, %s27, 0
        %s313 = smul.addr %s312, 4
        %s314 = smul.addr %s310, 4
        %s315 = sadd.s32 %s313, %s314
        %s316 = smul.addr %s315, 8
        %s317 = scalar_lea.vmem %s7, %s316
        %p318 = scmp.lt.s32.totalorder %s26, 1
        %s319 = scalar_select %p318, %s26, 1
        %p320 = scmp.lt.s32.totalorder %s27, 0
        %s321 = scalar_select %p320, %s27, 0
        %s322 = sadd.s32 %s321, %s319
        %s323 = smul.addr %s322, 4
        %s324 = scalar_lea.vmem %s0, %s323
        %p325 = scmp.lt.s32.totalorder %s26, 1
        %s326 = scalar_select %p325, %s26, 1
        %p327 = scmp.lt.s32.totalorder %s27, 0
        %s328 = scalar_select %p327, %s27, 0
        %s329 = smul.addr %s326, 2
        %s330 = sadd.s32 %s328, %s329
        %s331 = smul.addr %s330, 4
        %s332 = scalar_lea.vmem %s6, %s331
        %p333 = scmp.lt.s32.totalorder %s26, 1
        %s334 = scalar_select %p333, %s26, 1
        %p335 = scmp.lt.s32.totalorder %s27, 0
        %s336 = scalar_select %p335, %s27, 0
        %s337 = smul.addr %s336, 4
        %s338 = smul.addr %s334, 4
        %s339 = sadd.s32 %s337, %s338
        %s340 = smul.addr %s339, 8
        %s341 = scalar_lea.vmem %s7, %s340
        %v343 = vld [vmem:[%s3] sm:$0xf]
        %v344 = vld [vmem:[%s3 + $0x4] sm:$0xf]
        %v345 = vld [vmem:[%s4] sm:$0xff]
        %v346 = vld [vmem:[%s4 + $0x8] sm:$0xff]
        %v347 = vld [vmem:[%s1] sm:$0xff]
        %v348 = vld [vmem:[%s2] sm:$0xff]
        %v349 = vld [vmem:[%s324] sm:$0xf]
        %v350 = vunpack.c.l.bf16 %v349
        %352 = vset.pattern.permute.xlu0 0
        %353 = vperm.xlu0 %352, %v347
        %v354 = vpop.permute.xlu0 %353
        %v356 = vmul.f32 %v350, %v354
        %358 = vset.pattern.permute.xlu0 0
        %359 = vperm.xlu0 %358, %v348
        %v360 = vpop.permute.xlu0 %359
        %v362 = vadd.f32 %v356, %v360
        %vm363 = vcmask 130048
        %364 = vst.msk [vmem:[%s296] sm:$0xff] %vm363, %v362
        %v365 = vpack.c.bf16 %v362, %v362
        %367 = vset.pattern.permute.xlu0 0
        %368 = vperm.xlu0 %367, %v345
        %v369 = vpop.permute.xlu0 %368
        %372 = vset.pattern.permute.xlu0 0
        %373 = vperm.xlu0 %372, %v346
        %v374 = vpop.permute.xlu0 %373
        %v378 = vunpack.c.l.b16 %v343
        %v379 = vunpack.c.l.b16 %v344
        %v380 = vpack.c.b16 %v379, %v378
        %vm381 = vcmask 64512
        %v383 = vsel %vm381, %v380, 0
        %vm385 = vcmask 1043456
        %v387 = vsel %vm385, %v365, 0
        %389 = vmatpush.bf16.msra.mxu0 0
        %390 = vmatpush.bf16.msra.mxu0 0
        %391 = vmatpush.bf16.msra.mxu0 0
        %392 = vmatpush.bf16.msra.mxu0 0
        %393 = vmatpush.bf16.msra.mxu0 0
        %394 = vmatpush.bf16.msra.mxu0 0
        %395 = vmatpush.bf16.msra.mxu0 0
        %396 = vmatpush.bf16.msra.mxu0 %v387
        %397 = vmatmul.bf16.gmra.mxu0 %v383
        %v398 = vpop.f32.mrf.mxu0
        %v399 = vadd.f32 %v369, %v398
        %v400 = vpop.f32.mrf.mxu0
        %v401 = vadd.f32 %v374, %v400
        %402 = vdwg.mxu0
        %v403 = vmax.f32 %v399, 0.0
        %v404 = vmax.f32 %v401, 0.0
        %v405 = vpack.c.bf16 %v403, %v403
        %v406 = vpack.c.bf16 %v404, %v404
        %vm407 = vcmask 125952
        %408 = vst.msk [vmem:[%s332] sm:$0xf] %vm407, %v405
        %409 = vst.msk [vmem:[%s332 + $0x4] sm:$0xf] %vm407, %v406
        %v410 = vsel %vm363, %v403, 0.0
        %411 = vadd.xlane.f32.xlu0 %v410
        %v412 = vpop.xlane.xlu0 %411
        %v413 = vsel %vm363, %v404, 0.0
        %414 = vadd.xlane.f32.xlu0 %v413
        %v415 = vpop.xlane.xlu0 %414
        %v416 = vadd.f32 %v412, 0.0
        %v417 = vadd.f32 %v415, 0.0
        %v418 = vmul.f32 %v403, %v403
        %v419 = vmul.f32 %v404, %v404
        %v420 = vsel %vm363, %v418, 0.0
        %421 = vadd.xlane.f32.xlu0 %v420
        %v422 = vpop.xlane.xlu0 %421
        %v423 = vsel %vm363, %v419, 0.0
        %424 = vadd.xlane.f32.xlu0 %v423
        %v425 = vpop.xlane.xlu0 %424
        %v426 = vadd.f32 %v422, 0.0
        %v427 = vadd.f32 %v425, 0.0
        %vm428 = vcmask 7168
        %429 = vst.msk [vmem:[%s341] sm:$0xff] %vm428, %v416
        %430 = vst.msk [vmem:[%s341 + $0x8] sm:$0xff] %vm428, %v417
        %s431 = scalar_lea.vmem %s341, 16
        %432 = vst.msk [vmem:[%s431] sm:$0xff] %vm428, %v426
        %433 = vst.msk [vmem:[%s431 + $0x8] sm:$0xff] %vm428, %v427
        %s434 = sand.u32 %s156, 1
        %s435 = scalar_lea.sflag [#allocation3], %s434
        %s436 = sand.u32 %s156, 1
        %s437 = smul.addr %s436, 8
        %s438 = scalar_lea.vmem [#allocation2], %s437
        %p439 = scmp.lt.s32.totalorder %s26, 1
        %s440 = scalar_select %p439, %s26, 1
        %p441 = scmp.lt.s32.totalorder %s27, 0
        %s442 = scalar_select %p441, %s27, 0
        %s443 = smul.addr %s440, 2
        %s444 = sadd.s32 %s442, %s443
        %s445 = smul.addr %s444, 4
        %s446 = scalar_lea.vmem %s6, %s445
        %p447 = scmp.lt.s32.totalorder %s26, 1
        %s448 = scalar_select %p447, %s26, 1
        %p449 = scmp.lt.s32.totalorder %s27, 0
        %s450 = scalar_select %p449, %s27, 0
        %s451 = smul.addr %s450, 4
        %s452 = smul.addr %s448, 4
        %s453 = sadd.s32 %s451, %s452
        %s454 = smul.addr %s453, 8
        %s455 = scalar_lea.vmem %s7, %s454
        // Predicated region
        $region41: #{mlp_encoder_forward.4} parent=39 // pred_check
          %p456 = pneg %p166
        $region42: #{mlp_encoder_forward.4} parent=39 // pred_check_branch
          %458 = sbr.rel (%p456) target = $region44
        $region43: #{mlp_encoder_forward.4} parent=39 // pred_region
          %460 = vsyncadd %s435, 0
          %s461 = sadd.s32 %s27, %s26
          %s462 = smul.addr %s461, 8
          %s463 = scalar_lea.hbm %s5, %s462
          %s465 = sshll.u32 %s438, 4
          %s466 = int_to_ptr.vmem [resolvable:$true] %s465
          %s467 = sshll.u32 %s463, 4
          %s468 = int_to_ptr.hbm [resolvable:$true] %s467
          %470 = dma.vmem_to_hbm [thread:$0]  %s466, 128, %s468, %s435
        $region44: #{mlp_encoder_forward.4} parent=39 // pred_fallthru
          _
        // Predicated region
        $region45: #{mlp_encoder_forward.4} parent=39 // pred_check
          %p471 = pneg %p194
        $region46: #{mlp_encoder_forward.4} parent=39 // pred_check_branch
          %473 = sbr.rel (%p471) target = $region48
        $region47: #{mlp_encoder_forward.4} parent=39 // pred_region
          _
        $region48: #{mlp_encoder_forward.4} parent=39 // pred_fallthru
          _
        // Predicated region
        $region49: #{mlp_encoder_forward.4} parent=39 // pred_check
          %p474 = pneg %p222
        $region50: #{mlp_encoder_forward.4} parent=39 // pred_check_branch
          %476 = sbr.rel (%p474) target = $region52
        $region51: #{mlp_encoder_forward.4} parent=39 // pred_region
          _
        $region52: #{mlp_encoder_forward.4} parent=39 // pred_fallthru
          _
      $region40: #{mlp_encoder_forward.4} parent=5 // pred_fallthru
        _
      %p477 = scmp.le.s32.totalorder 2, %s17
      // Predicated region
      $region53: #{mlp_encoder_forward.4} parent=5 // pred_check
        %p478 = pneg %p477
      $region54: #{mlp_encoder_forward.4} parent=5 // pred_check_branch
        %480 = sbr.rel (%p478) target = $region56
      $region55: #{mlp_encoder_forward.4} parent=5 // pred_region
        %s481 = ssub.s32 %s17, 2
        // Predicated region
        $region57: #{mlp_encoder_forward.4} parent=55 // pred_check
          %p482 = pneg %p172
        $region58: #{mlp_encoder_forward.4} parent=55 // pred_check_branch
          %484 = sbr.rel (%p482) target = $region60
        $region59: #{mlp_encoder_forward.4} parent=55 // pred_region
          %s485 = sand.u32 %s157, 1
          %s486 = scalar_lea.sflag [#allocation3], %s485
          %s487 = sand.u32 %s157, 1
          %s488 = smul.addr %s487, 8
          %s489 = scalar_lea.vmem [#allocation2], %s488
          %491 = dma.done %s486, 128
        $region60: #{mlp_encoder_forward.4} parent=55 // pred_fallthru
          _
        // Predicated region
        $region61: #{mlp_encoder_forward.4} parent=55 // pred_check
          %p492 = pneg %p200
        $region62: #{mlp_encoder_forward.4} parent=55 // pred_check_branch
          %494 = sbr.rel (%p492) target = $region64
        $region63: #{mlp_encoder_forward.4} parent=55 // pred_region
          %p495 = scmp.lt.s32.totalorder %s28, 1
          %s496 = scalar_select %p495, %s28, 1
          %p497 = scmp.lt.s32.totalorder %s29, 0
          %s498 = scalar_select %p497, %s29, 0
          %s499 = smul.addr %s496, 2
          %s500 = sadd.s32 %s498, %s499
          %s501 = smul.addr %s500, 4
          %s502 = scalar_lea.vmem %s6, %s501
        $region64: #{mlp_encoder_forward.4} parent=55 // pred_fallthru
          _
        // Predicated region
        $region65: #{mlp_encoder_forward.4} parent=55 // pred_check
          %p503 = pneg %p228
        $region66: #{mlp_encoder_forward.4} parent=55 // pred_check_branch
          %505 = sbr.rel (%p503) target = $region68
        $region67: #{mlp_encoder_forward.4} parent=55 // pred_region
          %p506 = scmp.lt.s32.totalorder %s28, 1
          %s507 = scalar_select %p506, %s28, 1
          %p508 = scmp.lt.s32.totalorder %s29, 0
          %s509 = scalar_select %p508, %s29, 0
          %s510 = smul.addr %s509, 4
          %s511 = smul.addr %s507, 4
          %s512 = sadd.s32 %s510, %s511
          %s513 = smul.addr %s512, 8
          %s514 = scalar_lea.vmem %s7, %s513
        $region68: #{mlp_encoder_forward.4} parent=55 // pred_fallthru
          _
      $region56: #{mlp_encoder_forward.4} parent=5 // pred_fallthru
        _
    $region6: #{mlp_encoder_forward.4} parent=1 // loop_footer
      %s21 = sadd.s32 1, %s17
    $region7: #{mlp_encoder_forward.4} parent=1 // loop_footer_branch
      %16 = sbr.rel target = $region3
    $region8: #{mlp_encoder_forward.4} parent=1 // loop_exit
      _
    %515 = vsyncpa [#allocation3], 1
    %s516 = scalar_lea.sflag [#allocation3], 1
    %517 = vsyncpa %s516, 1

// kernel: mlp_encoder_forward.5
$region0: #{mlp_encoder_forward.5}
  #allocation0 [shape = 'u32[]', space=smem, size = 0x4, offset = 0x4, fixed_abs, tag = 'smem constant byte address 0x4 - core index']
  #allocation1 [shape = 'u32[72,128]{1,0:T(1,128)}', space=vmem, size = 0x9000, scoped, tag = 'internal scratch']
  %s0 = inlined_call_operand.vmem [shape: bf16[2,16,16], index: 0, kind: input, shape index: {}]
  %s1 = inlined_call_operand.vmem [shape: f32[16,1], index: 1, kind: input, shape index: {}]
  %s2 = inlined_call_operand.vmem [shape: f32[16,1], index: 2, kind: input, shape index: {}]
  %s3 = inlined_call_operand.vmem [shape: bf16[32,16], index: 3, kind: input, shape index: {}]
  %s4 = inlined_call_operand.vmem [shape: f32[32,1], index: 4, kind: input, shape index: {}]
  %s5 = inlined_call_operand.hbm [shape: f32[2,16,16], index: 5, kind: output, shape index: {0}]
  %s6 = inlined_call_operand.vmem [shape: f32[2,32,16], index: 6, kind: output, shape index: {1}]
  %7 = xla_tuple %s5, %s6
  %s8 = sld [smem:[#allocation0]]
  $region61: #{mlp_encoder_forward.5} parent=0
    _
  %s10 = ssub.s32 1, %s8
  %s11 = scalar_select 0, %s10, %s8
  $region1: #{mlp_encoder_forward.5} parent=0
    #allocation2 [shape = 'u8[16384]{0}', space=vmem, size = 0x4000, scoped, tag = 'output window, operand 0']
    #allocation3 [shape = 's32[2]{0}', space=sflag, size = 0x8, scoped, tag = 'scoped memory for mlp_encoder_forward.5']
    %12 = vsyncpa [#allocation3], 0
    %s13 = scalar_lea.sflag [#allocation3], 1
    %14 = vsyncpa %s13, 0
    loop: start=0, step=1, limit=4
    $region2: #{mlp_encoder_forward.5} parent=1 // loop_pre_header
      _
    $region3: #{mlp_encoder_forward.5} parent=1 // loop_header
      %s16 = sphi 0, %s20
      %p17 = scmp.ge.s32.totalorder %s16, 4
      %s23 = sphi 0, %s35
      %s24 = sphi 0, %s31
      %s25 = sphi 0, %s23
      %s26 = sphi 0, %s24
      %s27 = sphi 0, %s25
      %s28 = sphi 0, %s26
      %s40 = sphi 0, %s42
      %s43 = sphi 0, %s40
      %s44 = sphi 0, %s43
      %s60 = sphi 0, %s44
      %s64 = sphi 0, %s64
      %s66 = sphi 0, %s64
      %s67 = sphi 0, %s66
      %s81 = sphi 0, %s67
      %s85 = sphi 0, %s85
      %s87 = sphi 0, %s85
      %s88 = sphi 0, %s87
      %s102 = sphi 0, %s88
      %s106 = sphi 0, %s106
      %s108 = sphi 0, %s106
      %s109 = sphi 0, %s108
      %s123 = sphi 0, %s109
      %s127 = sphi 0, %s127
      %s129 = sphi 0, %s127
      %s130 = sphi 0, %s129
      %s144 = sphi 0, %s130
      %s152 = sphi 0, %s154
      %s155 = sphi 0, %s152
      %s156 = sphi 0, %s155
      %s172 = sphi 0, %s156
      %s180 = sphi 0, %s182
      %s183 = sphi 0, %s180
      %s184 = sphi 0, %s183
      %s200 = sphi 0, %s184
    $region4: #{mlp_encoder_forward.5} parent=1 // loop_header_branch
      %19 = sbr.rel (%p17) target = $region8
    $region5: #{mlp_encoder_forward.5} parent=1 // loop_body
      %s21 = ssub.s32 %s16, 1
      %s22 = ssub.s32 %s16, 2
      %s29 = sadd.s32 1, %s24
      %p30 = scmp.ge.s32.totalorder %s29, 1
      %s31 = scalar_select %p30, 0, %s29
      %s32 = sadd.s32 1, %s23
      %s33 = scalar_select %p30, %s32, %s23
      %p34 = scmp.ge.s32.totalorder %s33, 2
      %s35 = scalar_select %p34, 0, %s33
      %s36 = ssub.s32 %s23, %s35
      %s37 = ssub.s32 %s24, %s31
      %s38 = sor.u32 %s36, %s37
      %p39 = scmp.eq.s32.totalorder %s38, 0
      %s41 = sadd.s32 %s40, 1
      %s42 = scalar_select %p39, %s40, %s41
      %p45 = pneg %p39
      %p46 = scmp.eq.s32.totalorder %s16, 1
      %p47 = por %p45, %p46
      %p48 = scmp.ne.s32.totalorder %s40, %s43
      %p49 = scmp.eq.s32.totalorder %s16, 0
      %p50 = por %p48, %p49
      %p51 = scmp.ne.s32.totalorder %s40, %s43
      %p52 = scmp.eq.s32.totalorder %s21, 1
      %p53 = por %p51, %p52
      %p54 = scmp.ne.s32.totalorder %s43, %s44
      %p55 = scmp.eq.s32.totalorder %s21, 0
      %p56 = por %p54, %p55
      %p57 = scmp.ne.s32.totalorder %s43, %s44
      %p58 = scmp.eq.s32.totalorder %s22, 1
      %p59 = por %p57, %p58
      %p61 = scmp.ne.s32.totalorder %s44, %s60
      %p62 = scmp.eq.s32.totalorder %s22, 0
      %p63 = por %p61, %p62
      %s65 = sadd.s32 %s64, 1
      %p68 = scmp.eq.s32.totalorder %s16, 1
      %p69 = scmp.ne.s32.totalorder %s64, %s66
      %p70 = scmp.eq.s32.totalorder %s16, 0
      %p71 = por %p69, %p70
      %p72 = scmp.ne.s32.totalorder %s64, %s66
      %p73 = scmp.eq.s32.totalorder %s21, 1
      %p74 = por %p72, %p73
      %p75 = scmp.ne.s32.totalorder %s66, %s67
      %p76 = scmp.eq.s32.totalorder %s21, 0
      %p77 = por %p75, %p76
      %p78 = scmp.ne.s32.totalorder %s66, %s67
      %p79 = scmp.eq.s32.totalorder %s22, 1
      %p80 = por %p78, %p79
      %p82 = scmp.ne.s32.totalorder %s67, %s81
      %p83 = scmp.eq.s32.totalorder %s22, 0
      %p84 = por %p82, %p83
      %s86 = sadd.s32 %s85, 1
      %p89 = scmp.eq.s32.totalorder %s16, 1
      %p90 = scmp.ne.s32.totalorder %s85, %s87
      %p91 = scmp.eq.s32.totalorder %s16, 0
      %p92 = por %p90, %p91
      %p93 = scmp.ne.s32.totalorder %s85, %s87
      %p94 = scmp.eq.s32.totalorder %s21, 1
      %p95 = por %p93, %p94
      %p96 = scmp.ne.s32.totalorder %s87, %s88
      %p97 = scmp.eq.s32.totalorder %s21, 0
      %p98 = por %p96, %p97
      %p99 = scmp.ne.s32.totalorder %s87, %s88
      %p100 = scmp.eq.s32.totalorder %s22, 1
      %p101 = por %p99, %p100
      %p103 = scmp.ne.s32.totalorder %s88, %s102
      %p104 = scmp.eq.s32.totalorder %s22, 0
      %p105 = por %p103, %p104
      %s107 = sadd.s32 %s106, 1
      %p110 = scmp.eq.s32.totalorder %s16, 1
      %p111 = scmp.ne.s32.totalorder %s106, %s108
      %p112 = scmp.eq.s32.totalorder %s16, 0
      %p113 = por %p111, %p112
      %p114 = scmp.ne.s32.totalorder %s106, %s108
      %p115 = scmp.eq.s32.totalorder %s21, 1
      %p116 = por %p114, %p115
      %p117 = scmp.ne.s32.totalorder %s108, %s109
      %p118 = scmp.eq.s32.totalorder %s21, 0
      %p119 = por %p117, %p118
      %p120 = scmp.ne.s32.totalorder %s108, %s109
      %p121 = scmp.eq.s32.totalorder %s22, 1
      %p122 = por %p120, %p121
      %p124 = scmp.ne.s32.totalorder %s109, %s123
      %p125 = scmp.eq.s32.totalorder %s22, 0
      %p126 = por %p124, %p125
      %s128 = sadd.s32 %s127, 1
      %p131 = scmp.eq.s32.totalorder %s16, 1
      %p132 = scmp.ne.s32.totalorder %s127, %s129
      %p133 = scmp.eq.s32.totalorder %s16, 0
      %p134 = por %p132, %p133
      %p135 = scmp.ne.s32.totalorder %s127, %s129
      %p136 = scmp.eq.s32.totalorder %s21, 1
      %p137 = por %p135, %p136
      %p138 = scmp.ne.s32.totalorder %s129, %s130
      %p139 = scmp.eq.s32.totalorder %s21, 0
      %p140 = por %p138, %p139
      %p141 = scmp.ne.s32.totalorder %s129, %s130
      %p142 = scmp.eq.s32.totalorder %s22, 1
      %p143 = por %p141, %p142
      %p145 = scmp.ne.s32.totalorder %s130, %s144
      %p146 = scmp.eq.s32.totalorder %s22, 0
      %p147 = por %p145, %p146
      %s148 = ssub.s32 %s23, %s35
      %s149 = ssub.s32 %s24, %s31
      %s150 = sor.u32 %s148, %s149
      %p151 = scmp.eq.s32.totalorder %s150, 0
      %s153 = sadd.s32 %s152, 1
      %s154 = scalar_select %p151, %s152, %s153
      %p157 = pneg %p151
      %p158 = scmp.eq.s32.totalorder %s16, 1
      %p159 = por %p157, %p158
      %p160 = scmp.ne.s32.totalorder %s152, %s155
      %p161 = scmp.eq.s32.totalorder %s16, 0
      %p162 = por %p160, %p161
      %p163 = scmp.ne.s32.totalorder %s152, %s155
      %p164 = scmp.eq.s32.totalorder %s21, 1
      %p165 = por %p163, %p164
      %p166 = scmp.ne.s32.totalorder %s155, %s156
      %p167 = scmp.eq.s32.totalorder %s21, 0
      %p168 = por %p166, %p167
      %p169 = scmp.ne.s32.totalorder %s155, %s156
      %p170 = scmp.eq.s32.totalorder %s22, 1
      %p171 = por %p169, %p170
      %p173 = scmp.ne.s32.totalorder %s156, %s172
      %p174 = scmp.eq.s32.totalorder %s22, 0
      %p175 = por %p173, %p174
      %s176 = ssub.s32 %s23, %s35
      %s177 = ssub.s32 %s24, %s31
      %s178 = sor.u32 %s176, %s177
      %p179 = scmp.eq.s32.totalorder %s178, 0
      %s181 = sadd.s32 %s180, 1
      %s182 = scalar_select %p179, %s180, %s181
      %p185 = pneg %p179
      %p186 = scmp.eq.s32.totalorder %s16, 1
      %p187 = por %p185, %p186
      %p188 = scmp.ne.s32.totalorder %s180, %s183
      %p189 = scmp.eq.s32.totalorder %s16, 0
      %p190 = por %p188, %p189
      %p191 = scmp.ne.s32.totalorder %s180, %s183
      %p192 = scmp.eq.s32.totalorder %s21, 1
      %p193 = por %p191, %p192
      %p194 = scmp.ne.s32.totalorder %s183, %s184
      %p195 = scmp.eq.s32.totalorder %s21, 0
      %p196 = por %p194, %p195
      %p197 = scmp.ne.s32.totalorder %s183, %s184
      %p198 = scmp.eq.s32.totalorder %s22, 1
      %p199 = por %p197, %p198
      %p201 = scmp.ne.s32.totalorder %s184, %s200
      %p202 = scmp.eq.s32.totalorder %s22, 0
      %p203 = por %p201, %p202
      %p204 = scmp.le.s32.totalorder 1, %s16
      %p205 = scmp.lt.s32.totalorder %s16, 3
      %p206 = pnand %p204, %p205
      %p207 = pneg %p206
      // Predicated region
      $region9: #{mlp_encoder_forward.5} parent=5 // pred_check
        _
      $region10: #{mlp_encoder_forward.5} parent=5 // pred_check_branch
        %209 = sbr.rel (%p206) target = $region12
      $region11: #{mlp_encoder_forward.5} parent=5 // pred_region
        %s210 = ssub.s32 %s16, 1
        // Predicated region
        $region13: #{mlp_encoder_forward.5} parent=11 // pred_check
          %p211 = pneg %p77
        $region14: #{mlp_encoder_forward.5} parent=11 // pred_check_branch
          %213 = sbr.rel (%p211) target = $region16
        $region15: #{mlp_encoder_forward.5} parent=11 // pred_region
          _
        $region16: #{mlp_encoder_forward.5} parent=11 // pred_fallthru
          _
        // Predicated region
        $region17: #{mlp_encoder_forward.5} parent=11 // pred_check
          %p214 = pneg %p98
        $region18: #{mlp_encoder_forward.5} parent=11 // pred_check_branch
          %216 = sbr.rel (%p214) target = $region20
        $region19: #{mlp_encoder_forward.5} parent=11 // pred_region
          _
        $region20: #{mlp_encoder_forward.5} parent=11 // pred_fallthru
          _
        // Predicated region
        $region21: #{mlp_encoder_forward.5} parent=11 // pred_check
          %p217 = pneg %p119
        $region22: #{mlp_encoder_forward.5} parent=11 // pred_check_branch
          %219 = sbr.rel (%p217) target = $region24
        $region23: #{mlp_encoder_forward.5} parent=11 // pred_region
          _
        $region24: #{mlp_encoder_forward.5} parent=11 // pred_fallthru
          _
        // Predicated region
        $region25: #{mlp_encoder_forward.5} parent=11 // pred_check
          %p220 = pneg %p140
        $region26: #{mlp_encoder_forward.5} parent=11 // pred_check_branch
          %222 = sbr.rel (%p220) target = $region28
        $region27: #{mlp_encoder_forward.5} parent=11 // pred_region
          _
        $region28: #{mlp_encoder_forward.5} parent=11 // pred_fallthru
          _
      $region12: #{mlp_encoder_forward.5} parent=5 // pred_fallthru
        _
      %p223 = scmp.lt.s32.totalorder %s16, 2
      // Predicated region
      $region29: #{mlp_encoder_forward.5} parent=5 // pred_check
        %p224 = pneg %p223
      $region30: #{mlp_encoder_forward.5} parent=5 // pred_check_branch
        %226 = sbr.rel (%p224) target = $region32
      $region31: #{mlp_encoder_forward.5} parent=5 // pred_region
        // Predicated region
        $region33: #{mlp_encoder_forward.5} parent=31 // pred_check
          %p227 = pneg %p50
        $region34: #{mlp_encoder_forward.5} parent=31 // pred_check_branch
          %229 = sbr.rel (%p227) target = $region36
        $region35: #{mlp_encoder_forward.5} parent=31 // pred_region
          %p230 = scmp.lt.s32.totalorder %s23, 1
          %s231 = scalar_select %p230, %s23, 1
          %p232 = scmp.lt.s32.totalorder %s24, 0
          %s233 = scalar_select %p232, %s24, 0
          %s234 = smul.addr %s231, 2
          %s235 = sadd.s32 %s233, %s234
          %s236 = smul.addr %s235, 4
          %s237 = scalar_lea.vmem %s0, %s236
        $region36: #{mlp_encoder_forward.5} parent=31 // pred_fallthru
          _
      $region32: #{mlp_encoder_forward.5} parent=5 // pred_fallthru
        _
      %p238 = scmp.le.s32.totalorder 1, %s16
      %p239 = scmp.lt.s32.totalorder %s16, 3
      %p240 = pnand %p238, %p239
      %p241 = pneg %p240
      // Predicated region
      $region37: #{mlp_encoder_forward.5} parent=5 // pred_check
        _
      $region38: #{mlp_encoder_forward.5} parent=5 // pred_check_branch
        %243 = sbr.rel (%p240) target = $region40
      $region39: #{mlp_encoder_forward.5} parent=5 // pred_region
        %s244 = ssub.s32 %s16, 1
        %p245 = scmp.lt.s32.totalorder %s25, 1
        %s246 = scalar_select %p245, %s25, 1
        %p247 = scmp.lt.s32.totalorder %s26, 0
        %s248 = scalar_select %p247, %s26, 0
        %s249 = smul.addr %s246, 2
        %s250 = sadd.s32 %s248, %s249
        %s251 = smul.addr %s250, 4
        %s252 = scalar_lea.vmem %s0, %s251
        %p253 = pneg %p56
        %p254 = pneg %p53
        %p255 = pneg %p77
        %p256 = pneg %p74
        %p257 = pneg %p98
        %p258 = pneg %p95
        %p259 = pneg %p119
        %p260 = pneg %p116
        %p261 = pneg %p140
        %p262 = pneg %p137
        %p263 = pneg %p168
        %p264 = pneg %p165
        %s265 = sand.u32 %s155, 1
        %s266 = scalar_lea.sflag [#allocation3], %s265
        %s267 = sand.u32 %s155, 1
        %s268 = smul.addr %s267, 16
        %s269 = scalar_lea.vmem [#allocation2], %s268
        %p270 = pneg %p196
        %p271 = pneg %p193
        %p272 = scmp.lt.s32.totalorder %s25, 1
        %s273 = scalar_select %p272, %s25, 1
        %p274 = scmp.lt.s32.totalorder %s26, 0
        %s275 = scalar_select %p274, %s26, 0
        %s276 = smul.addr %s273, 4
        %s277 = sadd.s32 %s275, %s276
        %s278 = smul.addr %s277, 8
        %s279 = scalar_lea.vmem %s6, %s278
        %p280 = scmp.lt.s32.totalorder %s25, 1
        %s281 = scalar_select %p280, %s25, 1
        %p282 = scmp.lt.s32.totalorder %s26, 0
        %s283 = scalar_select %p282, %s26, 0
        %s284 = smul.addr %s281, 2
        %s285 = sadd.s32 %s283, %s284
        %s286 = smul.addr %s285, 4
        %s287 = scalar_lea.vmem %s0, %s286
        %p288 = scmp.lt.s32.totalorder %s25, 1
        %s289 = scalar_select %p288, %s25, 1
        %p290 = scmp.lt.s32.totalorder %s26, 0
        %s291 = scalar_select %p290, %s26, 0
        %s292 = smul.addr %s289, 4
        %s293 = sadd.s32 %s291, %s292
        %s294 = smul.addr %s293, 8
        %s295 = scalar_lea.vmem %s6, %s294
        %v297 = vld [vmem:[%s3] sm:$0xf]
        %v298 = vld [vmem:[%s3 + $0x4] sm:$0xf]
        %v299 = vld [vmem:[%s3 + $0x8] sm:$0xf]
        %v300 = vld [vmem:[%s3 + $0xc] sm:$0xf]
        %v301 = vld [vmem:[%s4] sm:$0xff]
        %v302 = vld [vmem:[%s4 + $0x8] sm:$0xff]
        %v303 = vld [vmem:[%s4 + $0x10] sm:$0xff]
        %v304 = vld [vmem:[%s4 + $0x18] sm:$0xff]
        %v305 = vld [vmem:[%s1] sm:$0xff]
        %v306 = vld [vmem:[%s1 + $0x8] sm:$0xff]
        %v307 = vld [vmem:[%s2] sm:$0xff]
        %v308 = vld [vmem:[%s2 + $0x8] sm:$0xff]
        %v309 = vld [vmem:[%s287] sm:$0xf]
        %v310 = vld [vmem:[%s287 + $0x4] sm:$0xf]
        %v311 = vunpack.c.l.bf16 %v309
        %v312 = vunpack.c.l.bf16 %v310
        %314 = vset.pattern.permute.xlu0 0
        %315 = vperm.xlu0 %314, %v305
        %v316 = vpop.permute.xlu0 %315
        %319 = vset.pattern.permute.xlu0 0
        %320 = vperm.xlu0 %319, %v306
        %v321 = vpop.permute.xlu0 %320
        %v323 = vmul.f32 %v311, %v316
        %v324 = vmul.f32 %v312, %v321
        %326 = vset.pattern.permute.xlu0 0
        %327 = vperm.xlu0 %326, %v307
        %v328 = vpop.permute.xlu0 %327
        %331 = vset.pattern.permute.xlu0 0
        %332 = vperm.xlu0 %331, %v308
        %v333 = vpop.permute.xlu0 %332
        %v335 = vadd.f32 %v323, %v328
        %v336 = vadd.f32 %v324, %v333
        %vm337 = vcmask 130048
        %338 = vst.msk [vmem:[%s269] sm:$0xff] %vm337, %v335
        %339 = vst.msk [vmem:[%s269 + $0x8] sm:$0xff] %vm337, %v336
        %v340 = vpack.c.bf16 %v336, %v335
        %342 = vset.pattern.permute.xlu0 0
        %343 = vperm.xlu0 %342, %v301
        %v344 = vpop.permute.xlu0 %343
        %347 = vset.pattern.permute.xlu0 0
        %348 = vperm.xlu0 %347, %v302
        %v349 = vpop.permute.xlu0 %348
        %352 = vset.pattern.permute.xlu0 0
        %353 = vperm.xlu0 %352, %v303
        %v354 = vpop.permute.xlu0 %353
        %357 = vset.pattern.permute.xlu0 0
        %358 = vperm.xlu0 %357, %v304
        %v359 = vpop.permute.xlu0 %358
        %v365 = vunpack.c.l.b16 %v297
        %v366 = vunpack.c.l.b16 %v298
        %v367 = vunpack.c.l.b16 %v299
        %v368 = vunpack.c.l.b16 %v300
        %v369 = vpack.c.b16 %v366, %v365
        %v370 = vpack.c.b16 %v368, %v367
        %v372 = vsel %vm337, %v369, 0
        %v375 = vsel %vm337, %v370, 0
        %377 = vmatpush.bf16.msra.mxu0 0
        %378 = vmatpush.bf16.msra.mxu0 0
        %379 = vmatpush.bf16.msra.mxu0 0
        %380 = vmatpush.bf16.msra.mxu0 0
        %381 = vmatpush.bf16.msra.mxu0 0
        %382 = vmatpush.bf16.msra.mxu0 0
        %383 = vmatpush.bf16.msra.mxu0 0
        %384 = vmatpush.bf16.msra.mxu0 %v340
        %385 = vmatmul.bf16.gmra.mxu0 %v372
        %v386 = vpop.f32.mrf.mxu0
        %v387 = vadd.f32 %v344, %v386
        %v388 = vpop.f32.mrf.mxu0
        %v389 = vadd.f32 %v349, %v388
        %390 = vmatmul.bf16.gmra.mxu0 %v375
        %v391 = vpop.f32.mrf.mxu0
        %v392 = vadd.f32 %v354, %v391
        %v393 = vpop.f32.mrf.mxu0
        %v394 = vadd.f32 %v359, %v393
        %395 = vdwg.mxu0
        %v396 = vmax.f32 %v387, 0.0
        %v397 = vmax.f32 %v389, 0.0
        %v398 = vmax.f32 %v392, 0.0
        %v399 = vmax.f32 %v394, 0.0
        %400 = vst.msk [vmem:[%s295] sm:$0xff] %vm337, %v396
        %401 = vst.msk [vmem:[%s295 + $0x8] sm:$0xff] %vm337, %v397
        %402 = vst.msk [vmem:[%s295 + $0x10] sm:$0xff] %vm337, %v398
        %403 = vst.msk [vmem:[%s295 + $0x18] sm:$0xff] %vm337, %v399
        %s404 = sand.u32 %s155, 1
        %s405 = scalar_lea.sflag [#allocation3], %s404
        %s406 = sand.u32 %s155, 1
        %s407 = smul.addr %s406, 16
        %s408 = scalar_lea.vmem [#allocation2], %s407
        %p409 = scmp.lt.s32.totalorder %s25, 1
        %s410 = scalar_select %p409, %s25, 1
        %p411 = scmp.lt.s32.totalorder %s26, 0
        %s412 = scalar_select %p411, %s26, 0
        %s413 = smul.addr %s410, 4
        %s414 = sadd.s32 %s412, %s413
        %s415 = smul.addr %s414, 8
        %s416 = scalar_lea.vmem %s6, %s415
        // Predicated region
        $region41: #{mlp_encoder_forward.5} parent=39 // pred_check
          %p417 = pneg %p165
        $region42: #{mlp_encoder_forward.5} parent=39 // pred_check_branch
          %419 = sbr.rel (%p417) target = $region44
        $region43: #{mlp_encoder_forward.5} parent=39 // pred_region
          %421 = vsyncadd %s405, 0
          %s422 = smul.addr %s25, 2
          %s423 = sadd.s32 %s26, %s422
          %s424 = smul.addr %s423, 8
          %s425 = scalar_lea.hbm %s5, %s424
          %s426 = sshll.u32 %s408, 4
          %s427 = int_to_ptr.vmem [resolvable:$true] %s426
          %s428 = sshll.u32 %s425, 4
          %s429 = int_to_ptr.hbm [resolvable:$true] %s428
          %434 = dma.vmem_to_hbm [thread:$0]  %s427, 256, %s429, %s405, 128, 128, 8
        $region44: #{mlp_encoder_forward.5} parent=39 // pred_fallthru
          _
        // Predicated region
        $region45: #{mlp_encoder_forward.5} parent=39 // pred_check
          %p435 = pneg %p193
        $region46: #{mlp_encoder_forward.5} parent=39 // pred_check_branch
          %437 = sbr.rel (%p435) target = $region48
        $region47: #{mlp_encoder_forward.5} parent=39 // pred_region
          _
        $region48: #{mlp_encoder_forward.5} parent=39 // pred_fallthru
          _
      $region40: #{mlp_encoder_forward.5} parent=5 // pred_fallthru
        _
      %p438 = scmp.le.s32.totalorder 2, %s16
      // Predicated region
      $region49: #{mlp_encoder_forward.5} parent=5 // pred_check
        %p439 = pneg %p438
      $region50: #{mlp_encoder_forward.5} parent=5 // pred_check_branch
        %441 = sbr.rel (%p439) target = $region52
      $region51: #{mlp_encoder_forward.5} parent=5 // pred_region
        %s442 = ssub.s32 %s16, 2
        // Predicated region
        $region53: #{mlp_encoder_forward.5} parent=51 // pred_check
          %p443 = pneg %p171
        $region54: #{mlp_encoder_forward.5} parent=51 // pred_check_branch
          %445 = sbr.rel (%p443) target = $region56
        $region55: #{mlp_encoder_forward.5} parent=51 // pred_region
          %s446 = sand.u32 %s156, 1
          %s447 = scalar_lea.sflag [#allocation3], %s446
          %s448 = sand.u32 %s156, 1
          %s449 = smul.addr %s448, 16
          %s450 = scalar_lea.vmem [#allocation2], %s449
          %452 = dma.done %s447, 256
        $region56: #{mlp_encoder_forward.5} parent=51 // pred_fallthru
          _
        // Predicated region
        $region57: #{mlp_encoder_forward.5} parent=51 // pred_check
          %p453 = pneg %p199
        $region58: #{mlp_encoder_forward.5} parent=51 // pred_check_branch
          %455 = sbr.rel (%p453) target = $region60
        $region59: #{mlp_encoder_forward.5} parent=51 // pred_region
          %p456 = scmp.lt.s32.totalorder %s27, 1
          %s457 = scalar_select %p456, %s27, 1
          %p458 = scmp.lt.s32.totalorder %s28, 0
          %s459 = scalar_select %p458, %s28, 0
          %s460 = smul.addr %s457, 4
          %s461 = sadd.s32 %s459, %s460
          %s462 = smul.addr %s461, 8
          %s463 = scalar_lea.vmem %s6, %s462
        $region60: #{mlp_encoder_forward.5} parent=51 // pred_fallthru
          _
      $region52: #{mlp_encoder_forward.5} parent=5 // pred_fallthru
        _
    $region6: #{mlp_encoder_forward.5} parent=1 // loop_footer
      %s20 = sadd.s32 1, %s16
    $region7: #{mlp_encoder_forward.5} parent=1 // loop_footer_branch
      %15 = sbr.rel target = $region3
    $region8: #{mlp_encoder_forward.5} parent=1 // loop_exit
      _
    %464 = vsyncpa [#allocation3], 1
    %s465 = scalar_lea.sflag [#allocation3], 1
    %466 = vsyncpa %s465, 1

</llo_original>
